<compile_context>
chip_gen: v7x
topology: tpu7x:2x2x1
jax: 0.10.0
libtpu: 0.0.40
codegen_flags: <defaults>
</compile_context>

<pallas_src>
import functools

import jax
import jax.numpy as jnp
from jax.experimental import pallas as pl
from jax.experimental.pallas import tpu as pltpu

K = 10
ALPHA = 0.1
BN_EPS = 1e-5
LANE = 128


def _round_up(n, m):
    return ((n + m - 1) // m) * m


def appnp1bn_kernel(s_ref, x_ref, w1_ref, b1_ref, w2_ref, b2_ref, o_ref, *,
                    num_classes, sx_first, fc_first):
    s = s_ref[...]                                    # (Np, Np) normalized adjacency

    # GCNConv with eval-mode BN pre-folded into (W1, b1). Matmul order picked so
    # the N^2-sized matmul contracts over the smaller of (fp, hp).
    if sx_first:
        sx = jnp.dot(s, x_ref[...], preferred_element_type=jnp.float32)
        h = jnp.dot(sx, w1_ref[...], preferred_element_type=jnp.float32) + b1_ref[...]
    else:
        xw = jnp.dot(x_ref[...], w1_ref[...], preferred_element_type=jnp.float32)
        h = jnp.dot(s, xw, preferred_element_type=jnp.float32) + b1_ref[...]
    h = jnp.maximum(h, 0.0)                           # ReLU (BN already folded)

    if fc_first:
        # fc (sans bias) before propagation: propagation and fc are both linear,
        # so propagate(h) @ W2 == propagate(h @ W2); shrinks the K-loop width.
        h = jnp.dot(h, w2_ref[...], preferred_element_type=jnp.float32)

    # APPNP propagation. (1-alpha)*S is not materialized: scale the per-step
    # result instead (keeps a single N^2 array live in VMEM).
    ah = ALPHA * h

    def step(_, z):
        return (1.0 - ALPHA) * jnp.dot(s, z, preferred_element_type=jnp.float32) + ah

    z = jax.lax.fori_loop(0, K, step, h, unroll=True)

    if fc_first:
        logits = z + b2_ref[...]
    else:
        logits = jnp.dot(z, w2_ref[...], preferred_element_type=jnp.float32) + b2_ref[...]

    # log_softmax over the true class columns (padded lanes masked out).
    col = jax.lax.broadcasted_iota(jnp.int32, logits.shape, 1)
    logits = jnp.where(col < num_classes, logits, jnp.float32(-1e30))
    m = jnp.max(logits, axis=1, keepdims=True)
    shifted = logits - m
    lse = jnp.log(jnp.sum(jnp.exp(shifted), axis=1, keepdims=True))
    o_ref[...] = (shifted - lse).astype(o_ref.dtype)


def _normalized_adjacency(num_nodes, edge_index):
    """Dense GCN norm: add self loops where missing, D^-1/2 (A+I) D^-1/2."""
    src, dst = edge_index[0], edge_index[1]
    a = jnp.zeros((num_nodes, num_nodes), jnp.float32).at[dst, src].add(1.0)
    diag = jnp.diagonal(a)
    a = a + jnp.diag(jnp.where(diag > 0, 0.0, 1.0))   # add_remaining_self_loops
    deg = a.sum(axis=1)
    dinv = jax.lax.rsqrt(deg)                         # deg >= 1 after self loops
    return dinv[:, None] * a * dinv[None, :]


def appnp1bn_forward(x, edge_index, w1, b1, bn_gamma, bn_beta, bn_mean, bn_var, w2, b2):
    """x: (N, Fin) f32; edge_index: (2, E) i32; w1: (H, Fin); w2: (C, H)."""
    n, fin = x.shape
    h_dim = w1.shape[0]
    c_dim = w2.shape[0]

    np_ = _round_up(n, LANE)
    fp = _round_up(fin, LANE)
    hp = _round_up(h_dim, LANE)
    cp = _round_up(c_dim, LANE)

    # Fold eval-mode BatchNorm1d into conv1's weight/bias:
    #   scale = gamma / sqrt(var + eps);  W1' = W1 * scale;  b1' = (b1-mean)*scale + beta
    scale = bn_gamma * jax.lax.rsqrt(bn_var + BN_EPS)
    w1f = w1 * scale[:, None]
    b1f = (b1 - bn_mean) * scale + bn_beta

    # Zero-pad node and feature dims to lane width 128: lane-dense MXU matmuls and
    # an unmasked lane-dense output store. Padded rows/columns of S are zero, so
    # they never contaminate real rows; padded hidden columns stay exactly zero
    # through ReLU/APPNP; padded class columns are masked before log_softmax and
    # all padding is sliced off below.
    s = jnp.pad(_normalized_adjacency(n, edge_index), ((0, np_ - n), (0, np_ - n)))
    xp = jnp.pad(x, ((0, np_ - n), (0, fp - fin)))
    w1p = jnp.pad(w1f.T, ((0, fp - fin), (0, hp - h_dim)))           # (fp, hp)
    b1p = jnp.pad(b1f.reshape(1, h_dim), ((0, 0), (0, hp - h_dim)))
    w2p = jnp.pad(w2.T, ((0, hp - h_dim), (0, cp - c_dim)))          # (hp, cp)
    b2p = jnp.pad(b2.reshape(1, c_dim), ((0, 0), (0, cp - c_dim)))

    sx_first = fp < hp          # contract the N^2 conv matmul over min(fp, hp)
    fc_first = cp < hp          # propagate in class space when it is narrower

    prop_w = cp if fc_first else hp
    flops = (2 * np_ * np_ * (fp if sx_first else hp)   # GCNConv N^2 matmul
             + 2 * np_ * fp * hp                        # GCNConv feature matmul
             + 2 * np_ * hp * cp                        # fc
             + 2 * K * np_ * np_ * prop_w)              # APPNP propagation
    bytes_accessed = 4 * (np_ * np_ + np_ * fp + fp * hp + hp
                          + hp * cp + cp + np_ * cp)
    cost = pl.CostEstimate(flops=flops, transcendentals=np_ * cp + np_,
                           bytes_accessed=bytes_accessed)

    # Resident VMEM: single-buffered inputs/output (no grid) + a few (Np, width)
    # intermediates; generous headroom, capped below v7x's 64 MiB physical VMEM.
    resident = 4 * (np_ * np_ + np_ * fp + fp * hp + hp * cp
                    + 3 * np_ * max(hp, cp) + np_ * cp + 2 * (hp + cp))
    vmem_limit = int(min(64 << 20, max(8 << 20, 4 * resident)))

    # Whole (padded) problem fits in VMEM: no grid, no pipeline machinery.
    vmem = pl.BlockSpec(memory_space=pltpu.MemorySpace.VMEM)
    out = pl.pallas_call(
        functools.partial(appnp1bn_kernel, num_classes=c_dim,
                          sx_first=sx_first, fc_first=fc_first),
        out_shape=jax.ShapeDtypeStruct((np_, cp), jnp.float32),
        in_specs=[vmem] * 6,
        out_specs=vmem,
        compiler_params=pltpu.CompilerParams(vmem_limit_bytes=vmem_limit),
        cost_estimate=cost,
    )(s, xp, w1p, b1p, w2p, b2p)
    return out[:n, :c_dim]


def reference_forward(x, edge_index, w1, b1, bn_gamma, bn_beta, bn_mean, bn_var, w2, b2):
    """Pure-JAX reference mirroring APPNP1BN in eval mode."""
    s = _normalized_adjacency(x.shape[0], edge_index)
    h = s @ (x @ w1.T) + b1
    h = (h - bn_mean) / jnp.sqrt(bn_var + BN_EPS) * bn_gamma + bn_beta
    h = jnp.maximum(h, 0.0)
    z = h
    for _ in range(K):
        z = (1.0 - ALPHA) * (s @ z) + ALPHA * h
    logits = z @ w2.T + b2
    return jax.nn.log_softmax(logits, axis=1)


if __name__ == "__main__":
    key = jax.random.PRNGKey(0)
    ks = jax.random.split(key, 11)

    # Small shapes consistent with the module. NOTE: the original module applies
    # BatchNorm1d(num_classes) to conv1's hidden_dim-wide output, so it only runs
    # when hidden_dim == num_classes; the demo mirrors that.
    N, E = 64, 256
    in_features = 32
    hidden_dim = 16
    num_classes = 16

    x = jax.random.normal(ks[0], (N, in_features), dtype=jnp.float32)
    src = jax.random.randint(ks[1], (E,), 0, N, dtype=jnp.int32)
    dst = jax.random.randint(ks[2], (E,), 0, N, dtype=jnp.int32)
    edge_index = jnp.stack([src, dst], axis=0)

    # GCNConv parameters: lin weight (hidden, in), bias (hidden,)
    bnd1 = 1.0 / (in_features ** 0.5)
    w1 = jax.random.uniform(ks[3], (hidden_dim, in_features), jnp.float32, -bnd1, bnd1)
    b1 = jax.random.uniform(ks[4], (hidden_dim,), jnp.float32, -bnd1, bnd1)

    # BatchNorm1d(num_classes) affine params + running stats (eval mode)
    bn_gamma = jax.random.uniform(ks[5], (num_classes,), jnp.float32, 0.5, 1.5)
    bn_beta = jax.random.uniform(ks[6], (num_classes,), jnp.float32, -0.5, 0.5)
    bn_mean = 0.1 * jax.random.normal(ks[7], (num_classes,), dtype=jnp.float32)
    bn_var = jax.random.uniform(ks[8], (num_classes,), jnp.float32, 0.5, 1.5)

    # fc parameters: weight (num_classes, hidden), bias (num_classes,)
    bnd2 = 1.0 / (hidden_dim ** 0.5)
    w2 = jax.random.uniform(ks[9], (num_classes, hidden_dim), jnp.float32, -bnd2, bnd2)
    b2 = jax.random.uniform(ks[10], (num_classes,), jnp.float32, -bnd2, bnd2)

    out = appnp1bn_forward(x, edge_index, w1, b1, bn_gamma, bn_beta,
                           bn_mean, bn_var, w2, b2)
    out = jax.block_until_ready(out)

    ref = reference_forward(x, edge_index, w1, b1, bn_gamma, bn_beta,
                            bn_mean, bn_var, w2, b2)

    assert out.shape == (N, num_classes)
    assert bool(jnp.isfinite(out).all()), "non-finite output"
    assert jnp.allclose(out, ref, atol=5e-4, rtol=5e-4), "mismatch vs reference"

    print("KERNEL_OK")
</pallas_src>

<mosaic_0001>
module attributes {stable_mosaic.version = 11 : i64} {
  func.func @appnp1bn_kernel(%arg0: memref<128x128xf32, #tpu.memory_space<vmem>>, %arg1: memref<128x128xf32, #tpu.memory_space<vmem>>, %arg2: memref<128x128xf32, #tpu.memory_space<vmem>>, %arg3: memref<1x128xf32, #tpu.memory_space<vmem>>, %arg4: memref<128x128xf32, #tpu.memory_space<vmem>>, %arg5: memref<1x128xf32, #tpu.memory_space<vmem>>, %arg6: memref<128x128xf32, #tpu.memory_space<vmem>>) attributes {dimension_semantics = [], scalar_prefetch = 0 : i64, scratch_operands = 0 : i64, tpu.core_type = #tpu.core_type<tc>} {
    %c0 = arith.constant 0 : index
    %c0_0 = arith.constant 0 : index
    %0 = vector.load %arg0[%c0, %c0_0] : memref<128x128xf32, #tpu.memory_space<vmem>>, vector<128x128xf32>
    %c0_1 = arith.constant 0 : index
    %c0_2 = arith.constant 0 : index
    %1 = vector.load %arg1[%c0_1, %c0_2] : memref<128x128xf32, #tpu.memory_space<vmem>>, vector<128x128xf32>
    %c0_3 = arith.constant 0 : index
    %c0_4 = arith.constant 0 : index
    %2 = vector.load %arg2[%c0_3, %c0_4] : memref<128x128xf32, #tpu.memory_space<vmem>>, vector<128x128xf32>
    %cst = arith.constant dense<0.000000e+00> : vector<128x128xf32>
    %3 = tpu.matmul %1, %2, %cst {dimension_numbers = #tpu.dot_dimension_numbers<[1], [0], [0], [1], [0, 0, 1, 1], [], []>} : vector<128x128xf32>, vector<128x128xf32>, vector<128x128xf32> -> vector<128x128xf32>
    %cst_5 = arith.constant dense<0.000000e+00> : vector<128x128xf32>
    %4 = tpu.matmul %0, %3, %cst_5 {dimension_numbers = #tpu.dot_dimension_numbers<[1], [0], [0], [1], [0, 0, 1, 1], [], []>} : vector<128x128xf32>, vector<128x128xf32>, vector<128x128xf32> -> vector<128x128xf32>
    %c0_6 = arith.constant 0 : index
    %c0_7 = arith.constant 0 : index
    %5 = vector.load %arg3[%c0_6, %c0_7] : memref<1x128xf32, #tpu.memory_space<vmem>>, vector<1x128xf32>
    %6 = vector.broadcast %5 : vector<1x128xf32> to vector<128x128xf32>
    %7 = arith.addf %4, %6 : vector<128x128xf32>
    %cst_8 = arith.constant 0.000000e+00 : f32
    %8 = vector.broadcast %cst_8 : f32 to vector<128x128xf32>
    %9 = arith.maximumf %7, %8 : vector<128x128xf32>
    %cst_9 = arith.constant 1.000000e-01 : f32
    %10 = vector.broadcast %cst_9 : f32 to vector<128x128xf32>
    %11 = arith.mulf %10, %9 : vector<128x128xf32>
    %c0_i32 = arith.constant 0 : i32
    %cst_10 = arith.constant dense<0.000000e+00> : vector<128x128xf32>
    %12 = tpu.matmul %0, %9, %cst_10 {dimension_numbers = #tpu.dot_dimension_numbers<[1], [0], [0], [1], [0, 0, 1, 1], [], []>} : vector<128x128xf32>, vector<128x128xf32>, vector<128x128xf32> -> vector<128x128xf32>
    %cst_11 = arith.constant 0.899999976 : f32
    %13 = vector.broadcast %cst_11 : f32 to vector<128x128xf32>
    %14 = arith.mulf %13, %12 : vector<128x128xf32>
    %15 = arith.addf %14, %11 : vector<128x128xf32>
    %c1_i32 = arith.constant 1 : i32
    %cst_12 = arith.constant dense<0.000000e+00> : vector<128x128xf32>
    %16 = tpu.matmul %0, %15, %cst_12 {dimension_numbers = #tpu.dot_dimension_numbers<[1], [0], [0], [1], [0, 0, 1, 1], [], []>} : vector<128x128xf32>, vector<128x128xf32>, vector<128x128xf32> -> vector<128x128xf32>
    %cst_13 = arith.constant 0.899999976 : f32
    %17 = vector.broadcast %cst_13 : f32 to vector<128x128xf32>
    %18 = arith.mulf %17, %16 : vector<128x128xf32>
    %19 = arith.addf %18, %11 : vector<128x128xf32>
    %c2_i32 = arith.constant 2 : i32
    %cst_14 = arith.constant dense<0.000000e+00> : vector<128x128xf32>
    %20 = tpu.matmul %0, %19, %cst_14 {dimension_numbers = #tpu.dot_dimension_numbers<[1], [0], [0], [1], [0, 0, 1, 1], [], []>} : vector<128x128xf32>, vector<128x128xf32>, vector<128x128xf32> -> vector<128x128xf32>
    %cst_15 = arith.constant 0.899999976 : f32
    %21 = vector.broadcast %cst_15 : f32 to vector<128x128xf32>
    %22 = arith.mulf %21, %20 : vector<128x128xf32>
    %23 = arith.addf %22, %11 : vector<128x128xf32>
    %c3_i32 = arith.constant 3 : i32
    %cst_16 = arith.constant dense<0.000000e+00> : vector<128x128xf32>
    %24 = tpu.matmul %0, %23, %cst_16 {dimension_numbers = #tpu.dot_dimension_numbers<[1], [0], [0], [1], [0, 0, 1, 1], [], []>} : vector<128x128xf32>, vector<128x128xf32>, vector<128x128xf32> -> vector<128x128xf32>
    %cst_17 = arith.constant 0.899999976 : f32
    %25 = vector.broadcast %cst_17 : f32 to vector<128x128xf32>
    %26 = arith.mulf %25, %24 : vector<128x128xf32>
    %27 = arith.addf %26, %11 : vector<128x128xf32>
    %c4_i32 = arith.constant 4 : i32
    %cst_18 = arith.constant dense<0.000000e+00> : vector<128x128xf32>
    %28 = tpu.matmul %0, %27, %cst_18 {dimension_numbers = #tpu.dot_dimension_numbers<[1], [0], [0], [1], [0, 0, 1, 1], [], []>} : vector<128x128xf32>, vector<128x128xf32>, vector<128x128xf32> -> vector<128x128xf32>
    %cst_19 = arith.constant 0.899999976 : f32
    %29 = vector.broadcast %cst_19 : f32 to vector<128x128xf32>
    %30 = arith.mulf %29, %28 : vector<128x128xf32>
    %31 = arith.addf %30, %11 : vector<128x128xf32>
    %c5_i32 = arith.constant 5 : i32
    %cst_20 = arith.constant dense<0.000000e+00> : vector<128x128xf32>
    %32 = tpu.matmul %0, %31, %cst_20 {dimension_numbers = #tpu.dot_dimension_numbers<[1], [0], [0], [1], [0, 0, 1, 1], [], []>} : vector<128x128xf32>, vector<128x128xf32>, vector<128x128xf32> -> vector<128x128xf32>
    %cst_21 = arith.constant 0.899999976 : f32
    %33 = vector.broadcast %cst_21 : f32 to vector<128x128xf32>
    %34 = arith.mulf %33, %32 : vector<128x128xf32>
    %35 = arith.addf %34, %11 : vector<128x128xf32>
    %c6_i32 = arith.constant 6 : i32
    %cst_22 = arith.constant dense<0.000000e+00> : vector<128x128xf32>
    %36 = tpu.matmul %0, %35, %cst_22 {dimension_numbers = #tpu.dot_dimension_numbers<[1], [0], [0], [1], [0, 0, 1, 1], [], []>} : vector<128x128xf32>, vector<128x128xf32>, vector<128x128xf32> -> vector<128x128xf32>
    %cst_23 = arith.constant 0.899999976 : f32
    %37 = vector.broadcast %cst_23 : f32 to vector<128x128xf32>
    %38 = arith.mulf %37, %36 : vector<128x128xf32>
    %39 = arith.addf %38, %11 : vector<128x128xf32>
    %c7_i32 = arith.constant 7 : i32
    %cst_24 = arith.constant dense<0.000000e+00> : vector<128x128xf32>
    %40 = tpu.matmul %0, %39, %cst_24 {dimension_numbers = #tpu.dot_dimension_numbers<[1], [0], [0], [1], [0, 0, 1, 1], [], []>} : vector<128x128xf32>, vector<128x128xf32>, vector<128x128xf32> -> vector<128x128xf32>
    %cst_25 = arith.constant 0.899999976 : f32
    %41 = vector.broadcast %cst_25 : f32 to vector<128x128xf32>
    %42 = arith.mulf %41, %40 : vector<128x128xf32>
    %43 = arith.addf %42, %11 : vector<128x128xf32>
    %c8_i32 = arith.constant 8 : i32
    %cst_26 = arith.constant dense<0.000000e+00> : vector<128x128xf32>
    %44 = tpu.matmul %0, %43, %cst_26 {dimension_numbers = #tpu.dot_dimension_numbers<[1], [0], [0], [1], [0, 0, 1, 1], [], []>} : vector<128x128xf32>, vector<128x128xf32>, vector<128x128xf32> -> vector<128x128xf32>
    %cst_27 = arith.constant 0.899999976 : f32
    %45 = vector.broadcast %cst_27 : f32 to vector<128x128xf32>
    %46 = arith.mulf %45, %44 : vector<128x128xf32>
    %47 = arith.addf %46, %11 : vector<128x128xf32>
    %c9_i32 = arith.constant 9 : i32
    %cst_28 = arith.constant dense<0.000000e+00> : vector<128x128xf32>
    %48 = tpu.matmul %0, %47, %cst_28 {dimension_numbers = #tpu.dot_dimension_numbers<[1], [0], [0], [1], [0, 0, 1, 1], [], []>} : vector<128x128xf32>, vector<128x128xf32>, vector<128x128xf32> -> vector<128x128xf32>
    %cst_29 = arith.constant 0.899999976 : f32
    %49 = vector.broadcast %cst_29 : f32 to vector<128x128xf32>
    %50 = arith.mulf %49, %48 : vector<128x128xf32>
    %51 = arith.addf %50, %11 : vector<128x128xf32>
    %c0_30 = arith.constant 0 : index
    %c0_31 = arith.constant 0 : index
    %52 = vector.load %arg4[%c0_30, %c0_31] : memref<128x128xf32, #tpu.memory_space<vmem>>, vector<128x128xf32>
    %cst_32 = arith.constant dense<0.000000e+00> : vector<128x128xf32>
    %53 = tpu.matmul %51, %52, %cst_32 {dimension_numbers = #tpu.dot_dimension_numbers<[1], [0], [0], [1], [0, 0, 1, 1], [], []>} : vector<128x128xf32>, vector<128x128xf32>, vector<128x128xf32> -> vector<128x128xf32>
    %c0_33 = arith.constant 0 : index
    %c0_34 = arith.constant 0 : index
    %54 = vector.load %arg5[%c0_33, %c0_34] : memref<1x128xf32, #tpu.memory_space<vmem>>, vector<1x128xf32>
    %55 = vector.broadcast %54 : vector<1x128xf32> to vector<128x128xf32>
    %56 = arith.addf %53, %55 : vector<128x128xf32>
    %57 = tpu.iota {dimensions = array<i32: 1>} : vector<128x128xi32>
    %c16_i32 = arith.constant 16 : i32
    %58 = vector.broadcast %c16_i32 : i32 to vector<128x128xi32>
    %59 = arith.cmpi slt, %57, %58 : vector<128x128xi32>
    %cst_35 = arith.constant -1.000000e+30 : f32
    %60 = vector.broadcast %cst_35 : f32 to vector<128x128xf32>
    %61 = arith.select %59, %56, %60 : vector<128x128xi1>, vector<128x128xf32>
    %cst_36 = arith.constant dense<0xFF800000> : vector<128xf32>
    %62 = vector.multi_reduction <maximumf>, %61, %cst_36 [1] : vector<128x128xf32> to vector<128xf32>
    %63 = vector.shape_cast %62 : vector<128xf32> to vector<128x1xf32>
    %64 = vector.broadcast %63 : vector<128x1xf32> to vector<128x128xf32>
    %65 = arith.subf %61, %64 : vector<128x128xf32>
    %66 = math.exp %65 : vector<128x128xf32>
    %cst_37 = arith.constant dense<0.000000e+00> : vector<128xf32>
    %67 = vector.multi_reduction <add>, %66, %cst_37 [1] : vector<128x128xf32> to vector<128xf32>
    %68 = vector.shape_cast %67 : vector<128xf32> to vector<128x1xf32>
    %69 = math.log %68 : vector<128x1xf32>
    %70 = vector.broadcast %69 : vector<128x1xf32> to vector<128x128xf32>
    %71 = arith.subf %65, %70 : vector<128x128xf32>
    %c0_38 = arith.constant 0 : index
    %c0_39 = arith.constant 0 : index
    %72 = vector.load %arg6[%c0_38, %c0_39] : memref<128x128xf32, #tpu.memory_space<vmem>>, vector<128x128xf32>
    tpu.vector_store %arg6[%c0_38, %c0_39], %71 {strides = array<i32>} : memref<128x128xf32, #tpu.memory_space<vmem>>, vector<128x128xf32>,
    return
  }
}

</mosaic_0001>

<llo_original>
// kernel: tpu_custom_call.1
$region0: #{tpu_custom_call.1}
  #allocation0 [shape = 'u32[]', space=smem, size = 0x4, offset = 0x4, fixed_abs, tag = 'smem constant byte address 0x4 - core index']
  #allocation1 [shape = 'u32[144,128]{1,0:T(1,128)}', space=vmem, size = 0x12000, scoped, tag = 'internal scratch']
  %s0 = inlined_call_operand.hbm [shape: f32[128,128], index: 0, kind: input, shape index: {}]
  %s1 = inlined_call_operand.hbm [shape: f32[128,128], index: 1, kind: input, shape index: {}]
  %s2 = inlined_call_operand.hbm [shape: f32[128,128], index: 2, kind: input, shape index: {}]
  %s3 = inlined_call_operand.vmem [shape: f32[1,128], index: 3, kind: input, shape index: {}]
  %s4 = inlined_call_operand.hbm [shape: f32[128,128], index: 4, kind: input, shape index: {}]
  %s5 = inlined_call_operand.vmem [shape: f32[1,128], index: 5, kind: input, shape index: {}]
  %s6 = inlined_call_operand.hbm [shape: f32[128,128], index: 6, kind: output, shape index: {}]
  %s7 = sld [smem:[#allocation0]]
  $region50: #{tpu_custom_call.1} parent=0
    _
  %s9 = ssub.s32 1, %s7
  %s10 = scalar_select 0, %s9, %s7
  $region1: #{tpu_custom_call.1} parent=0
    #allocation2 [shape = 'u8[65536]{0}', space=vmem, size = 0x10000, scoped, tag = 'input window, operand 0, single buffered']
    #allocation3 [shape = 's32[1]{0}', space=sflag, size = 0x4, scoped, tag = 'scoped memory for tpu_custom_call.1']
    #allocation4 [shape = 's32[1]{0}', space=sflag, size = 0x4, scoped, tag = 'scoped memory for tpu_custom_call.1']
    #allocation5 [shape = 'u8[65536]{0}', space=vmem, size = 0x10000, scoped, tag = 'input window, operand 1, single buffered']
    #allocation6 [shape = 's32[1]{0}', space=sflag, size = 0x4, scoped, tag = 'scoped memory for tpu_custom_call.1']
    #allocation7 [shape = 'u8[65536]{0}', space=vmem, size = 0x10000, scoped, tag = 'input window, operand 2, single buffered']
    #allocation8 [shape = 'u8[65536]{0}', space=vmem, size = 0x10000, scoped, tag = 'input window, operand 4, single buffered']
    #allocation9 [shape = 's32[1]{0}', space=sflag, size = 0x4, scoped, tag = 'scoped memory for tpu_custom_call.1']
    #allocation10 [shape = 'u8[65536]{0}', space=vmem, size = 0x10000, scoped, tag = 'output window, operand 0, single buffered']
    %11 = vsyncpa [#allocation3], 0
    %12 = vsyncpa [#allocation6], 0
    %13 = vsyncpa [#allocation9], 0
    %14 = vsyncpa [#allocation4], 0
    // Predicated region
    $region2: #{tpu_custom_call.1} parent=1 // pred_check
      _
    $region3: #{tpu_custom_call.1} parent=1 // pred_check_branch
      %16 = sbr.rel (0) target = $region5
    $region4: #{tpu_custom_call.1} parent=1 // pred_region
      %s18 = ssub.s32 2048, 2048
      %19 = vsyncadd [#allocation3], %s18
      %s20 = sshll.u32 [#allocation2], 4
      %s21 = int_to_ptr.vmem [resolvable:$true] %s20
      %26 = dma.hbm_to_vmem [thread:$0]  %s0, 2048, %s21, [#allocation3], 128, 128, 8
    $region5: #{tpu_custom_call.1} parent=1 // pred_fallthru
      _
    // Predicated region
    $region6: #{tpu_custom_call.1} parent=1 // pred_check
      _
    $region7: #{tpu_custom_call.1} parent=1 // pred_check_branch
      %28 = sbr.rel (0) target = $region9
    $region8: #{tpu_custom_call.1} parent=1 // pred_region
      %s30 = ssub.s32 2048, 2048
      %31 = vsyncadd [#allocation6], %s30
      %s32 = sshll.u32 [#allocation5], 4
      %s33 = int_to_ptr.vmem [resolvable:$true] %s32
      %38 = dma.hbm_to_vmem [thread:$0]  %s1, 2048, %s33, [#allocation6], 128, 128, 8
    $region9: #{tpu_custom_call.1} parent=1 // pred_fallthru
      _
    // Predicated region
    $region10: #{tpu_custom_call.1} parent=1 // pred_check
      _
    $region11: #{tpu_custom_call.1} parent=1 // pred_check_branch
      %40 = sbr.rel (0) target = $region13
    $region12: #{tpu_custom_call.1} parent=1 // pred_region
      %s42 = ssub.s32 2048, 2048
      %43 = vsyncadd [#allocation6], %s42
      %s44 = sshll.u32 [#allocation7], 4
      %s45 = int_to_ptr.vmem [resolvable:$true] %s44
      %50 = dma.hbm_to_vmem [thread:$0]  %s2, 2048, %s45, [#allocation6], 128, 128, 8
    $region13: #{tpu_custom_call.1} parent=1 // pred_fallthru
      _
    // Predicated region
    $region14: #{tpu_custom_call.1} parent=1 // pred_check
      _
    $region15: #{tpu_custom_call.1} parent=1 // pred_check_branch
      %52 = sbr.rel (0) target = $region17
    $region16: #{tpu_custom_call.1} parent=1 // pred_region
      _
    $region17: #{tpu_custom_call.1} parent=1 // pred_fallthru
      _
    // Predicated region
    $region18: #{tpu_custom_call.1} parent=1 // pred_check
      _
    $region19: #{tpu_custom_call.1} parent=1 // pred_check_branch
      %54 = sbr.rel (0) target = $region21
    $region20: #{tpu_custom_call.1} parent=1 // pred_region
      %s56 = ssub.s32 2048, 2048
      %57 = vsyncadd [#allocation9], %s56
      %s58 = sshll.u32 [#allocation8], 4
      %s59 = int_to_ptr.vmem [resolvable:$true] %s58
      %64 = dma.hbm_to_vmem [thread:$0]  %s4, 2048, %s59, [#allocation9], 128, 128, 8
    $region21: #{tpu_custom_call.1} parent=1 // pred_fallthru
      _
    // Predicated region
    $region22: #{tpu_custom_call.1} parent=1 // pred_check
      _
    $region23: #{tpu_custom_call.1} parent=1 // pred_check_branch
      %66 = sbr.rel (0) target = $region25
    $region24: #{tpu_custom_call.1} parent=1 // pred_region
      _
    $region25: #{tpu_custom_call.1} parent=1 // pred_fallthru
      _
    // Predicated region
    $region26: #{tpu_custom_call.1} parent=1 // pred_check
      _
    $region27: #{tpu_custom_call.1} parent=1 // pred_check_branch
      %68 = sbr.rel (0) target = $region29
    $region28: #{tpu_custom_call.1} parent=1 // pred_region
      %69 = dma.done [#allocation3], 2048
    $region29: #{tpu_custom_call.1} parent=1 // pred_fallthru
      _
    // Predicated region
    $region30: #{tpu_custom_call.1} parent=1 // pred_check
      _
    $region31: #{tpu_custom_call.1} parent=1 // pred_check_branch
      %71 = sbr.rel (0) target = $region33
    $region32: #{tpu_custom_call.1} parent=1 // pred_region
      %72 = dma.done [#allocation6], 2048
    $region33: #{tpu_custom_call.1} parent=1 // pred_fallthru
      _
    // Predicated region
    $region34: #{tpu_custom_call.1} parent=1 // pred_check
      _
    $region35: #{tpu_custom_call.1} parent=1 // pred_check_branch
      %74 = sbr.rel (0) target = $region37
    $region36: #{tpu_custom_call.1} parent=1 // pred_region
      %75 = dma.done [#allocation6], 2048
    $region37: #{tpu_custom_call.1} parent=1 // pred_fallthru
      _
    // Predicated region
    $region38: #{tpu_custom_call.1} parent=1 // pred_check
      _
    $region39: #{tpu_custom_call.1} parent=1 // pred_check_branch
      %77 = sbr.rel (0) target = $region41
    $region40: #{tpu_custom_call.1} parent=1 // pred_region
      %78 = dma.done [#allocation9], 2048
    $region41: #{tpu_custom_call.1} parent=1 // pred_fallthru
      _
    %v79 = vld [vmem:[#allocation2] sm:$0xff]
    %v80 = vld [vmem:[#allocation2 + $0x8] sm:$0xff]
    %v81 = vld [vmem:[#allocation2 + $0x10] sm:$0xff]
    %v82 = vld [vmem:[#allocation2 + $0x18] sm:$0xff]
    %v83 = vld [vmem:[#allocation2 + $0x20] sm:$0xff]
    %v84 = vld [vmem:[#allocation2 + $0x28] sm:$0xff]
    %v85 = vld [vmem:[#allocation2 + $0x30] sm:$0xff]
    %v86 = vld [vmem:[#allocation2 + $0x38] sm:$0xff]
    %v87 = vld [vmem:[#allocation2 + $0x40] sm:$0xff]
    %v88 = vld [vmem:[#allocation2 + $0x48] sm:$0xff]
    %v89 = vld [vmem:[#allocation2 + $0x50] sm:$0xff]
    %v90 = vld [vmem:[#allocation2 + $0x58] sm:$0xff]
    %v91 = vld [vmem:[#allocation2 + $0x60] sm:$0xff]
    %v92 = vld [vmem:[#allocation2 + $0x68] sm:$0xff]
    %v93 = vld [vmem:[#allocation2 + $0x70] sm:$0xff]
    %v94 = vld [vmem:[#allocation2 + $0x78] sm:$0xff]
    %v95 = vld [vmem:[#allocation5] sm:$0xff]
    %v96 = vld [vmem:[#allocation5 + $0x8] sm:$0xff]
    %v97 = vld [vmem:[#allocation5 + $0x10] sm:$0xff]
    %v98 = vld [vmem:[#allocation5 + $0x18] sm:$0xff]
    %v99 = vld [vmem:[#allocation5 + $0x20] sm:$0xff]
    %v100 = vld [vmem:[#allocation5 + $0x28] sm:$0xff]
    %v101 = vld [vmem:[#allocation5 + $0x30] sm:$0xff]
    %v102 = vld [vmem:[#allocation5 + $0x38] sm:$0xff]
    %v103 = vld [vmem:[#allocation5 + $0x40] sm:$0xff]
    %v104 = vld [vmem:[#allocation5 + $0x48] sm:$0xff]
    %v105 = vld [vmem:[#allocation5 + $0x50] sm:$0xff]
    %v106 = vld [vmem:[#allocation5 + $0x58] sm:$0xff]
    %v107 = vld [vmem:[#allocation5 + $0x60] sm:$0xff]
    %v108 = vld [vmem:[#allocation5 + $0x68] sm:$0xff]
    %v109 = vld [vmem:[#allocation5 + $0x70] sm:$0xff]
    %v110 = vld [vmem:[#allocation5 + $0x78] sm:$0xff]
    %v111 = vld [vmem:[#allocation7] sm:$0xff]
    %v112 = vld [vmem:[#allocation7 + $0x8] sm:$0xff]
    %v113 = vld [vmem:[#allocation7 + $0x10] sm:$0xff]
    %v114 = vld [vmem:[#allocation7 + $0x18] sm:$0xff]
    %v115 = vld [vmem:[#allocation7 + $0x20] sm:$0xff]
    %v116 = vld [vmem:[#allocation7 + $0x28] sm:$0xff]
    %v117 = vld [vmem:[#allocation7 + $0x30] sm:$0xff]
    %v118 = vld [vmem:[#allocation7 + $0x38] sm:$0xff]
    %v119 = vld [vmem:[#allocation7 + $0x40] sm:$0xff]
    %v120 = vld [vmem:[#allocation7 + $0x48] sm:$0xff]
    %v121 = vld [vmem:[#allocation7 + $0x50] sm:$0xff]
    %v122 = vld [vmem:[#allocation7 + $0x58] sm:$0xff]
    %v123 = vld [vmem:[#allocation7 + $0x60] sm:$0xff]
    %v124 = vld [vmem:[#allocation7 + $0x68] sm:$0xff]
    %v125 = vld [vmem:[#allocation7 + $0x70] sm:$0xff]
    %v126 = vld [vmem:[#allocation7 + $0x78] sm:$0xff]
    %127 = vmatprep.subr.mxu0 0.0
    %128 = vmatpush1.msra.mxu0 %v111
    %129 = vmatprep.subr.mxu0 0.0
    %130 = vmatpush1.msra.mxu0 %v112
    %131 = vmatprep.subr.mxu0 0.0
    %132 = vmatpush1.msra.mxu0 %v113
    %133 = vmatprep.subr.mxu0 0.0
    %134 = vmatpush1.msra.mxu0 %v114
    %135 = vmatprep.subr.mxu0 0.0
    %136 = vmatpush1.msra.mxu0 %v115
    %137 = vmatprep.subr.mxu0 0.0
    %138 = vmatpush1.msra.mxu0 %v116
    %139 = vmatprep.subr.mxu0 0.0
    %140 = vmatpush1.msra.mxu0 %v117
    %141 = vmatprep.subr.mxu0 0.0
    %142 = vmatpush1.msra.mxu0 %v118
    %143 = vmatprep.subr.mxu0 0.0
    %144 = vmatpush1.msra.mxu0 %v119
    %145 = vmatprep.subr.mxu0 0.0
    %146 = vmatpush1.msra.mxu0 %v120
    %147 = vmatprep.subr.mxu0 0.0
    %148 = vmatpush1.msra.mxu0 %v121
    %149 = vmatprep.subr.mxu0 0.0
    %150 = vmatpush1.msra.mxu0 %v122
    %151 = vmatprep.subr.mxu0 0.0
    %152 = vmatpush1.msra.mxu0 %v123
    %153 = vmatprep.subr.mxu0 0.0
    %154 = vmatpush1.msra.mxu0 %v124
    %155 = vmatprep.subr.mxu0 0.0
    %156 = vmatpush1.msra.mxu0 %v125
    %157 = vmatprep.subr.mxu0 0.0
    %158 = vmatpush1.msra.mxu0 %v126
    %159 = vmatprep.subr.mxu0 0.0
    %160 = vmatpush1.msra.mxu0 0.0
    %161 = vmatprep.subr.mxu0 0.0
    %162 = vmatpush1.msra.mxu0 0.0
    %163 = vmatprep.subr.mxu0 0.0
    %164 = vmatpush1.msra.mxu0 0.0
    %165 = vmatprep.subr.mxu0 0.0
    %166 = vmatpush1.msra.mxu0 0.0
    %167 = vmatprep.subr.mxu0 0.0
    %168 = vmatpush1.msra.mxu0 0.0
    %169 = vmatprep.subr.mxu0 0.0
    %170 = vmatpush1.msra.mxu0 0.0
    %171 = vmatprep.subr.mxu0 0.0
    %172 = vmatpush1.msra.mxu0 0.0
    %173 = vmatprep.subr.mxu0 0.0
    %174 = vmatpush1.msra.mxu0 0.0
    %175 = vmatprep.subr.mxu0 0.0
    %176 = vmatpush1.msra.mxu0 0.0
    %177 = vmatprep.subr.mxu0 0.0
    %178 = vmatpush1.msra.mxu0 0.0
    %179 = vmatprep.subr.mxu0 0.0
    %180 = vmatpush1.msra.mxu0 0.0
    %181 = vmatprep.subr.mxu0 0.0
    %182 = vmatpush1.msra.mxu0 0.0
    %183 = vmatprep.subr.mxu0 0.0
    %184 = vmatpush1.msra.mxu0 0.0
    %185 = vmatprep.subr.mxu0 0.0
    %186 = vmatpush1.msra.mxu0 0.0
    %187 = vmatprep.subr.mxu0 0.0
    %188 = vmatpush1.msra.mxu0 0.0
    %189 = vmatprep.subr.mxu0 0.0
    %190 = vmatpush1.msra.mxu0 0.0
    %191 = vmatprep.mubr.f32.mxu0 0.0
    %192 = vmatmul.mubr.f32.gmra.mrb[0].mxu0 %v95
    %v193 = vpop.f32.mrb[0].mxu0
    %v194 = vadd.f32 0.0, %v193
    %v195 = vpop.f32.mrb[0].mxu0
    %196 = vmatprep.mubr.f32.mxu0 0.0
    %197 = vmatmul.mubr.f32.gmra.mrb[0].mxu0 %v96
    %v198 = vpop.f32.mrb[0].mxu0
    %v199 = vadd.f32 0.0, %v198
    %v200 = vpop.f32.mrb[0].mxu0
    %201 = vmatprep.mubr.f32.mxu0 0.0
    %202 = vmatmul.mubr.f32.gmra.mrb[0].mxu0 %v97
    %v203 = vpop.f32.mrb[0].mxu0
    %v204 = vadd.f32 0.0, %v203
    %v205 = vpop.f32.mrb[0].mxu0
    %206 = vmatprep.mubr.f32.mxu0 0.0
    %207 = vmatmul.mubr.f32.gmra.mrb[0].mxu0 %v98
    %v208 = vpop.f32.mrb[0].mxu0
    %v209 = vadd.f32 0.0, %v208
    %v210 = vpop.f32.mrb[0].mxu0
    %211 = vmatprep.mubr.f32.mxu0 0.0
    %212 = vmatmul.mubr.f32.gmra.mrb[0].mxu0 %v99
    %v213 = vpop.f32.mrb[0].mxu0
    %v214 = vadd.f32 0.0, %v213
    %v215 = vpop.f32.mrb[0].mxu0
    %216 = vmatprep.mubr.f32.mxu0 0.0
    %217 = vmatmul.mubr.f32.gmra.mrb[0].mxu0 %v100
    %v218 = vpop.f32.mrb[0].mxu0
    %v219 = vadd.f32 0.0, %v218
    %v220 = vpop.f32.mrb[0].mxu0
    %221 = vmatprep.mubr.f32.mxu0 0.0
    %222 = vmatmul.mubr.f32.gmra.mrb[0].mxu0 %v101
    %v223 = vpop.f32.mrb[0].mxu0
    %v224 = vadd.f32 0.0, %v223
    %v225 = vpop.f32.mrb[0].mxu0
    %226 = vmatprep.mubr.f32.mxu0 0.0
    %227 = vmatmul.mubr.f32.gmra.mrb[0].mxu0 %v102
    %v228 = vpop.f32.mrb[0].mxu0
    %v229 = vadd.f32 0.0, %v228
    %v230 = vpop.f32.mrb[0].mxu0
    %231 = vmatprep.mubr.f32.mxu0 0.0
    %232 = vmatmul.mubr.f32.gmra.mrb[0].mxu0 %v103
    %v233 = vpop.f32.mrb[0].mxu0
    %v234 = vadd.f32 0.0, %v233
    %v235 = vpop.f32.mrb[0].mxu0
    %236 = vmatprep.mubr.f32.mxu0 0.0
    %237 = vmatmul.mubr.f32.gmra.mrb[0].mxu0 %v104
    %v238 = vpop.f32.mrb[0].mxu0
    %v239 = vadd.f32 0.0, %v238
    %v240 = vpop.f32.mrb[0].mxu0
    %241 = vmatprep.mubr.f32.mxu0 0.0
    %242 = vmatmul.mubr.f32.gmra.mrb[0].mxu0 %v105
    %v243 = vpop.f32.mrb[0].mxu0
    %v244 = vadd.f32 0.0, %v243
    %v245 = vpop.f32.mrb[0].mxu0
    %246 = vmatprep.mubr.f32.mxu0 0.0
    %247 = vmatmul.mubr.f32.gmra.mrb[0].mxu0 %v106
    %v248 = vpop.f32.mrb[0].mxu0
    %v249 = vadd.f32 0.0, %v248
    %v250 = vpop.f32.mrb[0].mxu0
    %251 = vmatprep.mubr.f32.mxu0 0.0
    %252 = vmatmul.mubr.f32.gmra.mrb[0].mxu0 %v107
    %v253 = vpop.f32.mrb[0].mxu0
    %v254 = vadd.f32 0.0, %v253
    %v255 = vpop.f32.mrb[0].mxu0
    %256 = vmatprep.mubr.f32.mxu0 0.0
    %257 = vmatmul.mubr.f32.gmra.mrb[0].mxu0 %v108
    %v258 = vpop.f32.mrb[0].mxu0
    %v259 = vadd.f32 0.0, %v258
    %v260 = vpop.f32.mrb[0].mxu0
    %261 = vmatprep.mubr.f32.mxu0 0.0
    %262 = vmatmul.mubr.f32.gmra.mrb[0].mxu0 %v109
    %v263 = vpop.f32.mrb[0].mxu0
    %v264 = vadd.f32 0.0, %v263
    %v265 = vpop.f32.mrb[0].mxu0
    %266 = vmatprep.mubr.f32.mxu0 0.0
    %267 = vmatmul.mubr.f32.gmra.mrb[0].mxu0 %v110
    %v268 = vpop.f32.mrb[0].mxu0
    %v269 = vadd.f32 0.0, %v268
    %v270 = vpop.f32.mrb[0].mxu0
    %271 = vdwg.mxu0
    %v272 = vld [vmem:[%s3] sm:$0x1]
    %v274 = vlaneseq
    %v275 = vshrl.u32 %v274, 7
    %v276 = vsub.s32 0, %v275
    %v277 = vrot.slane %v272, %v276
    %279 = vmatprep.subr.mxu0 0.0
    %280 = vmatpush1.msra.mxu0 %v194
    %281 = vmatprep.subr.mxu0 0.0
    %282 = vmatpush1.msra.mxu0 %v199
    %283 = vmatprep.subr.mxu0 0.0
    %284 = vmatpush1.msra.mxu0 %v204
    %285 = vmatprep.subr.mxu0 0.0
    %286 = vmatpush1.msra.mxu0 %v209
    %287 = vmatprep.subr.mxu0 0.0
    %288 = vmatpush1.msra.mxu0 %v214
    %289 = vmatprep.subr.mxu0 0.0
    %290 = vmatpush1.msra.mxu0 %v219
    %291 = vmatprep.subr.mxu0 0.0
    %292 = vmatpush1.msra.mxu0 %v224
    %293 = vmatprep.subr.mxu0 0.0
    %294 = vmatpush1.msra.mxu0 %v229
    %295 = vmatprep.subr.mxu0 0.0
    %296 = vmatpush1.msra.mxu0 %v234
    %297 = vmatprep.subr.mxu0 0.0
    %298 = vmatpush1.msra.mxu0 %v239
    %299 = vmatprep.subr.mxu0 0.0
    %300 = vmatpush1.msra.mxu0 %v244
    %301 = vmatprep.subr.mxu0 0.0
    %302 = vmatpush1.msra.mxu0 %v249
    %303 = vmatprep.subr.mxu0 0.0
    %304 = vmatpush1.msra.mxu0 %v254
    %305 = vmatprep.subr.mxu0 0.0
    %306 = vmatpush1.msra.mxu0 %v259
    %307 = vmatprep.subr.mxu0 0.0
    %308 = vmatpush1.msra.mxu0 %v264
    %309 = vmatprep.subr.mxu0 0.0
    %310 = vmatpush1.msra.mxu0 %v269
    %311 = vmatprep.subr.mxu0 0.0
    %312 = vmatpush1.msra.mxu0 0.0
    %313 = vmatprep.subr.mxu0 0.0
    %314 = vmatpush1.msra.mxu0 0.0
    %315 = vmatprep.subr.mxu0 0.0
    %316 = vmatpush1.msra.mxu0 0.0
    %317 = vmatprep.subr.mxu0 0.0
    %318 = vmatpush1.msra.mxu0 0.0
    %319 = vmatprep.subr.mxu0 0.0
    %320 = vmatpush1.msra.mxu0 0.0
    %321 = vmatprep.subr.mxu0 0.0
    %322 = vmatpush1.msra.mxu0 0.0
    %323 = vmatprep.subr.mxu0 0.0
    %324 = vmatpush1.msra.mxu0 0.0
    %325 = vmatprep.subr.mxu0 0.0
    %326 = vmatpush1.msra.mxu0 0.0
    %327 = vmatprep.subr.mxu0 0.0
    %328 = vmatpush1.msra.mxu0 0.0
    %329 = vmatprep.subr.mxu0 0.0
    %330 = vmatpush1.msra.mxu0 0.0
    %331 = vmatprep.subr.mxu0 0.0
    %332 = vmatpush1.msra.mxu0 0.0
    %333 = vmatprep.subr.mxu0 0.0
    %334 = vmatpush1.msra.mxu0 0.0
    %335 = vmatprep.subr.mxu0 0.0
    %336 = vmatpush1.msra.mxu0 0.0
    %337 = vmatprep.subr.mxu0 0.0
    %338 = vmatpush1.msra.mxu0 0.0
    %339 = vmatprep.subr.mxu0 0.0
    %340 = vmatpush1.msra.mxu0 0.0
    %341 = vmatprep.subr.mxu0 0.0
    %342 = vmatpush1.msra.mxu0 0.0
    %343 = vmatprep.mubr.f32.mxu0 0.0
    %344 = vmatmul.mubr.f32.gmra.mrb[0].mxu0 %v79
    %v345 = vpop.f32.mrb[0].mxu0
    %v346 = vadd.f32 %v277, %v345
    %v347 = vpop.f32.mrb[0].mxu0
    %348 = vmatprep.mubr.f32.mxu0 0.0
    %349 = vmatmul.mubr.f32.gmra.mrb[0].mxu0 %v80
    %v350 = vpop.f32.mrb[0].mxu0
    %v351 = vadd.f32 %v277, %v350
    %v352 = vpop.f32.mrb[0].mxu0
    %353 = vmatprep.mubr.f32.mxu0 0.0
    %354 = vmatmul.mubr.f32.gmra.mrb[0].mxu0 %v81
    %v355 = vpop.f32.mrb[0].mxu0
    %v356 = vadd.f32 %v277, %v355
    %v357 = vpop.f32.mrb[0].mxu0
    %358 = vmatprep.mubr.f32.mxu0 0.0
    %359 = vmatmul.mubr.f32.gmra.mrb[0].mxu0 %v82
    %v360 = vpop.f32.mrb[0].mxu0
    %v361 = vadd.f32 %v277, %v360
    %v362 = vpop.f32.mrb[0].mxu0
    %363 = vmatprep.mubr.f32.mxu0 0.0
    %364 = vmatmul.mubr.f32.gmra.mrb[0].mxu0 %v83
    %v365 = vpop.f32.mrb[0].mxu0
    %v366 = vadd.f32 %v277, %v365
    %v367 = vpop.f32.mrb[0].mxu0
    %368 = vmatprep.mubr.f32.mxu0 0.0
    %369 = vmatmul.mubr.f32.gmra.mrb[0].mxu0 %v84
    %v370 = vpop.f32.mrb[0].mxu0
    %v371 = vadd.f32 %v277, %v370
    %v372 = vpop.f32.mrb[0].mxu0
    %373 = vmatprep.mubr.f32.mxu0 0.0
    %374 = vmatmul.mubr.f32.gmra.mrb[0].mxu0 %v85
    %v375 = vpop.f32.mrb[0].mxu0
    %v376 = vadd.f32 %v277, %v375
    %v377 = vpop.f32.mrb[0].mxu0
    %378 = vmatprep.mubr.f32.mxu0 0.0
    %379 = vmatmul.mubr.f32.gmra.mrb[0].mxu0 %v86
    %v380 = vpop.f32.mrb[0].mxu0
    %v381 = vadd.f32 %v277, %v380
    %v382 = vpop.f32.mrb[0].mxu0
    %383 = vmatprep.mubr.f32.mxu0 0.0
    %384 = vmatmul.mubr.f32.gmra.mrb[0].mxu0 %v87
    %v385 = vpop.f32.mrb[0].mxu0
    %v386 = vadd.f32 %v277, %v385
    %v387 = vpop.f32.mrb[0].mxu0
    %388 = vmatprep.mubr.f32.mxu0 0.0
    %389 = vmatmul.mubr.f32.gmra.mrb[0].mxu0 %v88
    %v390 = vpop.f32.mrb[0].mxu0
    %v391 = vadd.f32 %v277, %v390
    %v392 = vpop.f32.mrb[0].mxu0
    %393 = vmatprep.mubr.f32.mxu0 0.0
    %394 = vmatmul.mubr.f32.gmra.mrb[0].mxu0 %v89
    %v395 = vpop.f32.mrb[0].mxu0
    %v396 = vadd.f32 %v277, %v395
    %v397 = vpop.f32.mrb[0].mxu0
    %398 = vmatprep.mubr.f32.mxu0 0.0
    %399 = vmatmul.mubr.f32.gmra.mrb[0].mxu0 %v90
    %v400 = vpop.f32.mrb[0].mxu0
    %v401 = vadd.f32 %v277, %v400
    %v402 = vpop.f32.mrb[0].mxu0
    %403 = vmatprep.mubr.f32.mxu0 0.0
    %404 = vmatmul.mubr.f32.gmra.mrb[0].mxu0 %v91
    %v405 = vpop.f32.mrb[0].mxu0
    %v406 = vadd.f32 %v277, %v405
    %v407 = vpop.f32.mrb[0].mxu0
    %408 = vmatprep.mubr.f32.mxu0 0.0
    %409 = vmatmul.mubr.f32.gmra.mrb[0].mxu0 %v92
    %v410 = vpop.f32.mrb[0].mxu0
    %v411 = vadd.f32 %v277, %v410
    %v412 = vpop.f32.mrb[0].mxu0
    %413 = vmatprep.mubr.f32.mxu0 0.0
    %414 = vmatmul.mubr.f32.gmra.mrb[0].mxu0 %v93
    %v415 = vpop.f32.mrb[0].mxu0
    %v416 = vadd.f32 %v277, %v415
    %v417 = vpop.f32.mrb[0].mxu0
    %418 = vmatprep.mubr.f32.mxu0 0.0
    %419 = vmatmul.mubr.f32.gmra.mrb[0].mxu0 %v94
    %v420 = vpop.f32.mrb[0].mxu0
    %v421 = vadd.f32 %v277, %v420
    %v422 = vpop.f32.mrb[0].mxu0
    %423 = vdwg.mxu0
    %v424 = vmax.f32 %v346, 0.0
    %v425 = vmax.f32 %v351, 0.0
    %v426 = vmax.f32 %v356, 0.0
    %v427 = vmax.f32 %v361, 0.0
    %v428 = vmax.f32 %v366, 0.0
    %v429 = vmax.f32 %v371, 0.0
    %v430 = vmax.f32 %v376, 0.0
    %v431 = vmax.f32 %v381, 0.0
    %v432 = vmax.f32 %v386, 0.0
    %v433 = vmax.f32 %v391, 0.0
    %v434 = vmax.f32 %v396, 0.0
    %v435 = vmax.f32 %v401, 0.0
    %v436 = vmax.f32 %v406, 0.0
    %v437 = vmax.f32 %v411, 0.0
    %v438 = vmax.f32 %v416, 0.0
    %v439 = vmax.f32 %v421, 0.0
    %v440 = vmul.f32 %v424, 0.1
    %v441 = vmul.f32 %v425, 0.1
    %v442 = vmul.f32 %v426, 0.1
    %v443 = vmul.f32 %v427, 0.1
    %v444 = vmul.f32 %v428, 0.1
    %v445 = vmul.f32 %v429, 0.1
    %v446 = vmul.f32 %v430, 0.1
    %v447 = vmul.f32 %v431, 0.1
    %v448 = vmul.f32 %v432, 0.1
    %v449 = vmul.f32 %v433, 0.1
    %v450 = vmul.f32 %v434, 0.1
    %v451 = vmul.f32 %v435, 0.1
    %v452 = vmul.f32 %v436, 0.1
    %v453 = vmul.f32 %v437, 0.1
    %v454 = vmul.f32 %v438, 0.1
    %v455 = vmul.f32 %v439, 0.1
    %456 = vmatprep.subr.mxu0 0.0
    %457 = vmatpush1.msra.mxu0 %v424
    %458 = vmatprep.subr.mxu0 0.0
    %459 = vmatpush1.msra.mxu0 %v425
    %460 = vmatprep.subr.mxu0 0.0
    %461 = vmatpush1.msra.mxu0 %v426
    %462 = vmatprep.subr.mxu0 0.0
    %463 = vmatpush1.msra.mxu0 %v427
    %464 = vmatprep.subr.mxu0 0.0
    %465 = vmatpush1.msra.mxu0 %v428
    %466 = vmatprep.subr.mxu0 0.0
    %467 = vmatpush1.msra.mxu0 %v429
    %468 = vmatprep.subr.mxu0 0.0
    %469 = vmatpush1.msra.mxu0 %v430
    %470 = vmatprep.subr.mxu0 0.0
    %471 = vmatpush1.msra.mxu0 %v431
    %472 = vmatprep.subr.mxu0 0.0
    %473 = vmatpush1.msra.mxu0 %v432
    %474 = vmatprep.subr.mxu0 0.0
    %475 = vmatpush1.msra.mxu0 %v433
    %476 = vmatprep.subr.mxu0 0.0
    %477 = vmatpush1.msra.mxu0 %v434
    %478 = vmatprep.subr.mxu0 0.0
    %479 = vmatpush1.msra.mxu0 %v435
    %480 = vmatprep.subr.mxu0 0.0
    %481 = vmatpush1.msra.mxu0 %v436
    %482 = vmatprep.subr.mxu0 0.0
    %483 = vmatpush1.msra.mxu0 %v437
    %484 = vmatprep.subr.mxu0 0.0
    %485 = vmatpush1.msra.mxu0 %v438
    %486 = vmatprep.subr.mxu0 0.0
    %487 = vmatpush1.msra.mxu0 %v439
    %488 = vmatprep.subr.mxu0 0.0
    %489 = vmatpush1.msra.mxu0 0.0
    %490 = vmatprep.subr.mxu0 0.0
    %491 = vmatpush1.msra.mxu0 0.0
    %492 = vmatprep.subr.mxu0 0.0
    %493 = vmatpush1.msra.mxu0 0.0
    %494 = vmatprep.subr.mxu0 0.0
    %495 = vmatpush1.msra.mxu0 0.0
    %496 = vmatprep.subr.mxu0 0.0
    %497 = vmatpush1.msra.mxu0 0.0
    %498 = vmatprep.subr.mxu0 0.0
    %499 = vmatpush1.msra.mxu0 0.0
    %500 = vmatprep.subr.mxu0 0.0
    %501 = vmatpush1.msra.mxu0 0.0
    %502 = vmatprep.subr.mxu0 0.0
    %503 = vmatpush1.msra.mxu0 0.0
    %504 = vmatprep.subr.mxu0 0.0
    %505 = vmatpush1.msra.mxu0 0.0
    %506 = vmatprep.subr.mxu0 0.0
    %507 = vmatpush1.msra.mxu0 0.0
    %508 = vmatprep.subr.mxu0 0.0
    %509 = vmatpush1.msra.mxu0 0.0
    %510 = vmatprep.subr.mxu0 0.0
    %511 = vmatpush1.msra.mxu0 0.0
    %512 = vmatprep.subr.mxu0 0.0
    %513 = vmatpush1.msra.mxu0 0.0
    %514 = vmatprep.subr.mxu0 0.0
    %515 = vmatpush1.msra.mxu0 0.0
    %516 = vmatprep.subr.mxu0 0.0
    %517 = vmatpush1.msra.mxu0 0.0
    %518 = vmatprep.subr.mxu0 0.0
    %519 = vmatpush1.msra.mxu0 0.0
    %520 = vmatprep.mubr.f32.mxu0 0.0
    %521 = vmatmul.mubr.f32.gmra.mrb[0].mxu0 %v79
    %v522 = vpop.f32.mrb[0].mxu0
    %v523 = vadd.f32 0.0, %v522
    %v524 = vpop.f32.mrb[0].mxu0
    %525 = vmatprep.mubr.f32.mxu0 0.0
    %526 = vmatmul.mubr.f32.gmra.mrb[0].mxu0 %v80
    %v527 = vpop.f32.mrb[0].mxu0
    %v528 = vadd.f32 0.0, %v527
    %v529 = vpop.f32.mrb[0].mxu0
    %530 = vmatprep.mubr.f32.mxu0 0.0
    %531 = vmatmul.mubr.f32.gmra.mrb[0].mxu0 %v81
    %v532 = vpop.f32.mrb[0].mxu0
    %v533 = vadd.f32 0.0, %v532
    %v534 = vpop.f32.mrb[0].mxu0
    %535 = vmatprep.mubr.f32.mxu0 0.0
    %536 = vmatmul.mubr.f32.gmra.mrb[0].mxu0 %v82
    %v537 = vpop.f32.mrb[0].mxu0
    %v538 = vadd.f32 0.0, %v537
    %v539 = vpop.f32.mrb[0].mxu0
    %540 = vmatprep.mubr.f32.mxu0 0.0
    %541 = vmatmul.mubr.f32.gmra.mrb[0].mxu0 %v83
    %v542 = vpop.f32.mrb[0].mxu0
    %v543 = vadd.f32 0.0, %v542
    %v544 = vpop.f32.mrb[0].mxu0
    %545 = vmatprep.mubr.f32.mxu0 0.0
    %546 = vmatmul.mubr.f32.gmra.mrb[0].mxu0 %v84
    %v547 = vpop.f32.mrb[0].mxu0
    %v548 = vadd.f32 0.0, %v547
    %v549 = vpop.f32.mrb[0].mxu0
    %550 = vmatprep.mubr.f32.mxu0 0.0
    %551 = vmatmul.mubr.f32.gmra.mrb[0].mxu0 %v85
    %v552 = vpop.f32.mrb[0].mxu0
    %v553 = vadd.f32 0.0, %v552
    %v554 = vpop.f32.mrb[0].mxu0
    %555 = vmatprep.mubr.f32.mxu0 0.0
    %556 = vmatmul.mubr.f32.gmra.mrb[0].mxu0 %v86
    %v557 = vpop.f32.mrb[0].mxu0
    %v558 = vadd.f32 0.0, %v557
    %v559 = vpop.f32.mrb[0].mxu0
    %560 = vmatprep.mubr.f32.mxu0 0.0
    %561 = vmatmul.mubr.f32.gmra.mrb[0].mxu0 %v87
    %v562 = vpop.f32.mrb[0].mxu0
    %v563 = vadd.f32 0.0, %v562
    %v564 = vpop.f32.mrb[0].mxu0
    %565 = vmatprep.mubr.f32.mxu0 0.0
    %566 = vmatmul.mubr.f32.gmra.mrb[0].mxu0 %v88
    %v567 = vpop.f32.mrb[0].mxu0
    %v568 = vadd.f32 0.0, %v567
    %v569 = vpop.f32.mrb[0].mxu0
    %570 = vmatprep.mubr.f32.mxu0 0.0
    %571 = vmatmul.mubr.f32.gmra.mrb[0].mxu0 %v89
    %v572 = vpop.f32.mrb[0].mxu0
    %v573 = vadd.f32 0.0, %v572
    %v574 = vpop.f32.mrb[0].mxu0
    %575 = vmatprep.mubr.f32.mxu0 0.0
    %576 = vmatmul.mubr.f32.gmra.mrb[0].mxu0 %v90
    %v577 = vpop.f32.mrb[0].mxu0
    %v578 = vadd.f32 0.0, %v577
    %v579 = vpop.f32.mrb[0].mxu0
    %580 = vmatprep.mubr.f32.mxu0 0.0
    %581 = vmatmul.mubr.f32.gmra.mrb[0].mxu0 %v91
    %v582 = vpop.f32.mrb[0].mxu0
    %v583 = vadd.f32 0.0, %v582
    %v584 = vpop.f32.mrb[0].mxu0
    %585 = vmatprep.mubr.f32.mxu0 0.0
    %586 = vmatmul.mubr.f32.gmra.mrb[0].mxu0 %v92
    %v587 = vpop.f32.mrb[0].mxu0
    %v588 = vadd.f32 0.0, %v587
    %v589 = vpop.f32.mrb[0].mxu0
    %590 = vmatprep.mubr.f32.mxu0 0.0
    %591 = vmatmul.mubr.f32.gmra.mrb[0].mxu0 %v93
    %v592 = vpop.f32.mrb[0].mxu0
    %v593 = vadd.f32 0.0, %v592
    %v594 = vpop.f32.mrb[0].mxu0
    %595 = vmatprep.mubr.f32.mxu0 0.0
    %596 = vmatmul.mubr.f32.gmra.mrb[0].mxu0 %v94
    %v597 = vpop.f32.mrb[0].mxu0
    %v598 = vadd.f32 0.0, %v597
    %v599 = vpop.f32.mrb[0].mxu0
    %600 = vdwg.mxu0
    %v601 = vmul.f32 %v523, 0.9
    %v602 = vmul.f32 %v528, 0.9
    %v603 = vmul.f32 %v533, 0.9
    %v604 = vmul.f32 %v538, 0.9
    %v605 = vmul.f32 %v543, 0.9
    %v606 = vmul.f32 %v548, 0.9
    %v607 = vmul.f32 %v553, 0.9
    %v608 = vmul.f32 %v558, 0.9
    %v609 = vmul.f32 %v563, 0.9
    %v610 = vmul.f32 %v568, 0.9
    %v611 = vmul.f32 %v573, 0.9
    %v612 = vmul.f32 %v578, 0.9
    %v613 = vmul.f32 %v583, 0.9
    %v614 = vmul.f32 %v588, 0.9
    %v615 = vmul.f32 %v593, 0.9
    %v616 = vmul.f32 %v598, 0.9
    %v617 = vadd.f32 %v601, %v440
    %v618 = vadd.f32 %v602, %v441
    %v619 = vadd.f32 %v603, %v442
    %v620 = vadd.f32 %v604, %v443
    %v621 = vadd.f32 %v605, %v444
    %v622 = vadd.f32 %v606, %v445
    %v623 = vadd.f32 %v607, %v446
    %v624 = vadd.f32 %v608, %v447
    %v625 = vadd.f32 %v609, %v448
    %v626 = vadd.f32 %v610, %v449
    %v627 = vadd.f32 %v611, %v450
    %v628 = vadd.f32 %v612, %v451
    %v629 = vadd.f32 %v613, %v452
    %v630 = vadd.f32 %v614, %v453
    %v631 = vadd.f32 %v615, %v454
    %v632 = vadd.f32 %v616, %v455
    %633 = vmatprep.subr.mxu0 0.0
    %634 = vmatpush1.msra.mxu0 %v617
    %635 = vmatprep.subr.mxu0 0.0
    %636 = vmatpush1.msra.mxu0 %v618
    %637 = vmatprep.subr.mxu0 0.0
    %638 = vmatpush1.msra.mxu0 %v619
    %639 = vmatprep.subr.mxu0 0.0
    %640 = vmatpush1.msra.mxu0 %v620
    %641 = vmatprep.subr.mxu0 0.0
    %642 = vmatpush1.msra.mxu0 %v621
    %643 = vmatprep.subr.mxu0 0.0
    %644 = vmatpush1.msra.mxu0 %v622
    %645 = vmatprep.subr.mxu0 0.0
    %646 = vmatpush1.msra.mxu0 %v623
    %647 = vmatprep.subr.mxu0 0.0
    %648 = vmatpush1.msra.mxu0 %v624
    %649 = vmatprep.subr.mxu0 0.0
    %650 = vmatpush1.msra.mxu0 %v625
    %651 = vmatprep.subr.mxu0 0.0
    %652 = vmatpush1.msra.mxu0 %v626
    %653 = vmatprep.subr.mxu0 0.0
    %654 = vmatpush1.msra.mxu0 %v627
    %655 = vmatprep.subr.mxu0 0.0
    %656 = vmatpush1.msra.mxu0 %v628
    %657 = vmatprep.subr.mxu0 0.0
    %658 = vmatpush1.msra.mxu0 %v629
    %659 = vmatprep.subr.mxu0 0.0
    %660 = vmatpush1.msra.mxu0 %v630
    %661 = vmatprep.subr.mxu0 0.0
    %662 = vmatpush1.msra.mxu0 %v631
    %663 = vmatprep.subr.mxu0 0.0
    %664 = vmatpush1.msra.mxu0 %v632
    %665 = vmatprep.subr.mxu0 0.0
    %666 = vmatpush1.msra.mxu0 0.0
    %667 = vmatprep.subr.mxu0 0.0
    %668 = vmatpush1.msra.mxu0 0.0
    %669 = vmatprep.subr.mxu0 0.0
    %670 = vmatpush1.msra.mxu0 0.0
    %671 = vmatprep.subr.mxu0 0.0
    %672 = vmatpush1.msra.mxu0 0.0
    %673 = vmatprep.subr.mxu0 0.0
    %674 = vmatpush1.msra.mxu0 0.0
    %675 = vmatprep.subr.mxu0 0.0
    %676 = vmatpush1.msra.mxu0 0.0
    %677 = vmatprep.subr.mxu0 0.0
    %678 = vmatpush1.msra.mxu0 0.0
    %679 = vmatprep.subr.mxu0 0.0
    %680 = vmatpush1.msra.mxu0 0.0
    %681 = vmatprep.subr.mxu0 0.0
    %682 = vmatpush1.msra.mxu0 0.0
    %683 = vmatprep.subr.mxu0 0.0
    %684 = vmatpush1.msra.mxu0 0.0
    %685 = vmatprep.subr.mxu0 0.0
    %686 = vmatpush1.msra.mxu0 0.0
    %687 = vmatprep.subr.mxu0 0.0
    %688 = vmatpush1.msra.mxu0 0.0
    %689 = vmatprep.subr.mxu0 0.0
    %690 = vmatpush1.msra.mxu0 0.0
    %691 = vmatprep.subr.mxu0 0.0
    %692 = vmatpush1.msra.mxu0 0.0
    %693 = vmatprep.subr.mxu0 0.0
    %694 = vmatpush1.msra.mxu0 0.0
    %695 = vmatprep.subr.mxu0 0.0
    %696 = vmatpush1.msra.mxu0 0.0
    %697 = vmatprep.mubr.f32.mxu0 0.0
    %698 = vmatmul.mubr.f32.gmra.mrb[0].mxu0 %v79
    %v699 = vpop.f32.mrb[0].mxu0
    %v700 = vadd.f32 0.0, %v699
    %v701 = vpop.f32.mrb[0].mxu0
    %702 = vmatprep.mubr.f32.mxu0 0.0
    %703 = vmatmul.mubr.f32.gmra.mrb[0].mxu0 %v80
    %v704 = vpop.f32.mrb[0].mxu0
    %v705 = vadd.f32 0.0, %v704
    %v706 = vpop.f32.mrb[0].mxu0
    %707 = vmatprep.mubr.f32.mxu0 0.0
    %708 = vmatmul.mubr.f32.gmra.mrb[0].mxu0 %v81
    %v709 = vpop.f32.mrb[0].mxu0
    %v710 = vadd.f32 0.0, %v709
    %v711 = vpop.f32.mrb[0].mxu0
    %712 = vmatprep.mubr.f32.mxu0 0.0
    %713 = vmatmul.mubr.f32.gmra.mrb[0].mxu0 %v82
    %v714 = vpop.f32.mrb[0].mxu0
    %v715 = vadd.f32 0.0, %v714
    %v716 = vpop.f32.mrb[0].mxu0
    %717 = vmatprep.mubr.f32.mxu0 0.0
    %718 = vmatmul.mubr.f32.gmra.mrb[0].mxu0 %v83
    %v719 = vpop.f32.mrb[0].mxu0
    %v720 = vadd.f32 0.0, %v719
    %v721 = vpop.f32.mrb[0].mxu0
    %722 = vmatprep.mubr.f32.mxu0 0.0
    %723 = vmatmul.mubr.f32.gmra.mrb[0].mxu0 %v84
    %v724 = vpop.f32.mrb[0].mxu0
    %v725 = vadd.f32 0.0, %v724
    %v726 = vpop.f32.mrb[0].mxu0
    %727 = vmatprep.mubr.f32.mxu0 0.0
    %728 = vmatmul.mubr.f32.gmra.mrb[0].mxu0 %v85
    %v729 = vpop.f32.mrb[0].mxu0
    %v730 = vadd.f32 0.0, %v729
    %v731 = vpop.f32.mrb[0].mxu0
    %732 = vmatprep.mubr.f32.mxu0 0.0
    %733 = vmatmul.mubr.f32.gmra.mrb[0].mxu0 %v86
    %v734 = vpop.f32.mrb[0].mxu0
    %v735 = vadd.f32 0.0, %v734
    %v736 = vpop.f32.mrb[0].mxu0
    %737 = vmatprep.mubr.f32.mxu0 0.0
    %738 = vmatmul.mubr.f32.gmra.mrb[0].mxu0 %v87
    %v739 = vpop.f32.mrb[0].mxu0
    %v740 = vadd.f32 0.0, %v739
    %v741 = vpop.f32.mrb[0].mxu0
    %742 = vmatprep.mubr.f32.mxu0 0.0
    %743 = vmatmul.mubr.f32.gmra.mrb[0].mxu0 %v88
    %v744 = vpop.f32.mrb[0].mxu0
    %v745 = vadd.f32 0.0, %v744
    %v746 = vpop.f32.mrb[0].mxu0
    %747 = vmatprep.mubr.f32.mxu0 0.0
    %748 = vmatmul.mubr.f32.gmra.mrb[0].mxu0 %v89
    %v749 = vpop.f32.mrb[0].mxu0
    %v750 = vadd.f32 0.0, %v749
    %v751 = vpop.f32.mrb[0].mxu0
    %752 = vmatprep.mubr.f32.mxu0 0.0
    %753 = vmatmul.mubr.f32.gmra.mrb[0].mxu0 %v90
    %v754 = vpop.f32.mrb[0].mxu0
    %v755 = vadd.f32 0.0, %v754
    %v756 = vpop.f32.mrb[0].mxu0
    %757 = vmatprep.mubr.f32.mxu0 0.0
    %758 = vmatmul.mubr.f32.gmra.mrb[0].mxu0 %v91
    %v759 = vpop.f32.mrb[0].mxu0
    %v760 = vadd.f32 0.0, %v759
    %v761 = vpop.f32.mrb[0].mxu0
    %762 = vmatprep.mubr.f32.mxu0 0.0
    %763 = vmatmul.mubr.f32.gmra.mrb[0].mxu0 %v92
    %v764 = vpop.f32.mrb[0].mxu0
    %v765 = vadd.f32 0.0, %v764
    %v766 = vpop.f32.mrb[0].mxu0
    %767 = vmatprep.mubr.f32.mxu0 0.0
    %768 = vmatmul.mubr.f32.gmra.mrb[0].mxu0 %v93
    %v769 = vpop.f32.mrb[0].mxu0
    %v770 = vadd.f32 0.0, %v769
    %v771 = vpop.f32.mrb[0].mxu0
    %772 = vmatprep.mubr.f32.mxu0 0.0
    %773 = vmatmul.mubr.f32.gmra.mrb[0].mxu0 %v94
    %v774 = vpop.f32.mrb[0].mxu0
    %v775 = vadd.f32 0.0, %v774
    %v776 = vpop.f32.mrb[0].mxu0
    %777 = vdwg.mxu0
    %v778 = vmul.f32 %v700, 0.9
    %v779 = vmul.f32 %v705, 0.9
    %v780 = vmul.f32 %v710, 0.9
    %v781 = vmul.f32 %v715, 0.9
    %v782 = vmul.f32 %v720, 0.9
    %v783 = vmul.f32 %v725, 0.9
    %v784 = vmul.f32 %v730, 0.9
    %v785 = vmul.f32 %v735, 0.9
    %v786 = vmul.f32 %v740, 0.9
    %v787 = vmul.f32 %v745, 0.9
    %v788 = vmul.f32 %v750, 0.9
    %v789 = vmul.f32 %v755, 0.9
    %v790 = vmul.f32 %v760, 0.9
    %v791 = vmul.f32 %v765, 0.9
    %v792 = vmul.f32 %v770, 0.9
    %v793 = vmul.f32 %v775, 0.9
    %v794 = vadd.f32 %v778, %v440
    %v795 = vadd.f32 %v779, %v441
    %v796 = vadd.f32 %v780, %v442
    %v797 = vadd.f32 %v781, %v443
    %v798 = vadd.f32 %v782, %v444
    %v799 = vadd.f32 %v783, %v445
    %v800 = vadd.f32 %v784, %v446
    %v801 = vadd.f32 %v785, %v447
    %v802 = vadd.f32 %v786, %v448
    %v803 = vadd.f32 %v787, %v449
    %v804 = vadd.f32 %v788, %v450
    %v805 = vadd.f32 %v789, %v451
    %v806 = vadd.f32 %v790, %v452
    %v807 = vadd.f32 %v791, %v453
    %v808 = vadd.f32 %v792, %v454
    %v809 = vadd.f32 %v793, %v455
    %810 = vmatprep.subr.mxu0 0.0
    %811 = vmatpush1.msra.mxu0 %v794
    %812 = vmatprep.subr.mxu0 0.0
    %813 = vmatpush1.msra.mxu0 %v795
    %814 = vmatprep.subr.mxu0 0.0
    %815 = vmatpush1.msra.mxu0 %v796
    %816 = vmatprep.subr.mxu0 0.0
    %817 = vmatpush1.msra.mxu0 %v797
    %818 = vmatprep.subr.mxu0 0.0
    %819 = vmatpush1.msra.mxu0 %v798
    %820 = vmatprep.subr.mxu0 0.0
    %821 = vmatpush1.msra.mxu0 %v799
    %822 = vmatprep.subr.mxu0 0.0
    %823 = vmatpush1.msra.mxu0 %v800
    %824 = vmatprep.subr.mxu0 0.0
    %825 = vmatpush1.msra.mxu0 %v801
    %826 = vmatprep.subr.mxu0 0.0
    %827 = vmatpush1.msra.mxu0 %v802
    %828 = vmatprep.subr.mxu0 0.0
    %829 = vmatpush1.msra.mxu0 %v803
    %830 = vmatprep.subr.mxu0 0.0
    %831 = vmatpush1.msra.mxu0 %v804
    %832 = vmatprep.subr.mxu0 0.0
    %833 = vmatpush1.msra.mxu0 %v805
    %834 = vmatprep.subr.mxu0 0.0
    %835 = vmatpush1.msra.mxu0 %v806
    %836 = vmatprep.subr.mxu0 0.0
    %837 = vmatpush1.msra.mxu0 %v807
    %838 = vmatprep.subr.mxu0 0.0
    %839 = vmatpush1.msra.mxu0 %v808
    %840 = vmatprep.subr.mxu0 0.0
    %841 = vmatpush1.msra.mxu0 %v809
    %842 = vmatprep.subr.mxu0 0.0
    %843 = vmatpush1.msra.mxu0 0.0
    %844 = vmatprep.subr.mxu0 0.0
    %845 = vmatpush1.msra.mxu0 0.0
    %846 = vmatprep.subr.mxu0 0.0
    %847 = vmatpush1.msra.mxu0 0.0
    %848 = vmatprep.subr.mxu0 0.0
    %849 = vmatpush1.msra.mxu0 0.0
    %850 = vmatprep.subr.mxu0 0.0
    %851 = vmatpush1.msra.mxu0 0.0
    %852 = vmatprep.subr.mxu0 0.0
    %853 = vmatpush1.msra.mxu0 0.0
    %854 = vmatprep.subr.mxu0 0.0
    %855 = vmatpush1.msra.mxu0 0.0
    %856 = vmatprep.subr.mxu0 0.0
    %857 = vmatpush1.msra.mxu0 0.0
    %858 = vmatprep.subr.mxu0 0.0
    %859 = vmatpush1.msra.mxu0 0.0
    %860 = vmatprep.subr.mxu0 0.0
    %861 = vmatpush1.msra.mxu0 0.0
    %862 = vmatprep.subr.mxu0 0.0
    %863 = vmatpush1.msra.mxu0 0.0
    %864 = vmatprep.subr.mxu0 0.0
    %865 = vmatpush1.msra.mxu0 0.0
    %866 = vmatprep.subr.mxu0 0.0
    %867 = vmatpush1.msra.mxu0 0.0
    %868 = vmatprep.subr.mxu0 0.0
    %869 = vmatpush1.msra.mxu0 0.0
    %870 = vmatprep.subr.mxu0 0.0
    %871 = vmatpush1.msra.mxu0 0.0
    %872 = vmatprep.subr.mxu0 0.0
    %873 = vmatpush1.msra.mxu0 0.0
    %874 = vmatprep.mubr.f32.mxu0 0.0
    %875 = vmatmul.mubr.f32.gmra.mrb[0].mxu0 %v79
    %v876 = vpop.f32.mrb[0].mxu0
    %v877 = vadd.f32 0.0, %v876
    %v878 = vpop.f32.mrb[0].mxu0
    %879 = vmatprep.mubr.f32.mxu0 0.0
    %880 = vmatmul.mubr.f32.gmra.mrb[0].mxu0 %v80
    %v881 = vpop.f32.mrb[0].mxu0
    %v882 = vadd.f32 0.0, %v881
    %v883 = vpop.f32.mrb[0].mxu0
    %884 = vmatprep.mubr.f32.mxu0 0.0
    %885 = vmatmul.mubr.f32.gmra.mrb[0].mxu0 %v81
    %v886 = vpop.f32.mrb[0].mxu0
    %v887 = vadd.f32 0.0, %v886
    %v888 = vpop.f32.mrb[0].mxu0
    %889 = vmatprep.mubr.f32.mxu0 0.0
    %890 = vmatmul.mubr.f32.gmra.mrb[0].mxu0 %v82
    %v891 = vpop.f32.mrb[0].mxu0
    %v892 = vadd.f32 0.0, %v891
    %v893 = vpop.f32.mrb[0].mxu0
    %894 = vmatprep.mubr.f32.mxu0 0.0
    %895 = vmatmul.mubr.f32.gmra.mrb[0].mxu0 %v83
    %v896 = vpop.f32.mrb[0].mxu0
    %v897 = vadd.f32 0.0, %v896
    %v898 = vpop.f32.mrb[0].mxu0
    %899 = vmatprep.mubr.f32.mxu0 0.0
    %900 = vmatmul.mubr.f32.gmra.mrb[0].mxu0 %v84
    %v901 = vpop.f32.mrb[0].mxu0
    %v902 = vadd.f32 0.0, %v901
    %v903 = vpop.f32.mrb[0].mxu0
    %904 = vmatprep.mubr.f32.mxu0 0.0
    %905 = vmatmul.mubr.f32.gmra.mrb[0].mxu0 %v85
    %v906 = vpop.f32.mrb[0].mxu0
    %v907 = vadd.f32 0.0, %v906
    %v908 = vpop.f32.mrb[0].mxu0
    %909 = vmatprep.mubr.f32.mxu0 0.0
    %910 = vmatmul.mubr.f32.gmra.mrb[0].mxu0 %v86
    %v911 = vpop.f32.mrb[0].mxu0
    %v912 = vadd.f32 0.0, %v911
    %v913 = vpop.f32.mrb[0].mxu0
    %914 = vmatprep.mubr.f32.mxu0 0.0
    %915 = vmatmul.mubr.f32.gmra.mrb[0].mxu0 %v87
    %v916 = vpop.f32.mrb[0].mxu0
    %v917 = vadd.f32 0.0, %v916
    %v918 = vpop.f32.mrb[0].mxu0
    %919 = vmatprep.mubr.f32.mxu0 0.0
    %920 = vmatmul.mubr.f32.gmra.mrb[0].mxu0 %v88
    %v921 = vpop.f32.mrb[0].mxu0
    %v922 = vadd.f32 0.0, %v921
    %v923 = vpop.f32.mrb[0].mxu0
    %924 = vmatprep.mubr.f32.mxu0 0.0
    %925 = vmatmul.mubr.f32.gmra.mrb[0].mxu0 %v89
    %v926 = vpop.f32.mrb[0].mxu0
    %v927 = vadd.f32 0.0, %v926
    %v928 = vpop.f32.mrb[0].mxu0
    %929 = vmatprep.mubr.f32.mxu0 0.0
    %930 = vmatmul.mubr.f32.gmra.mrb[0].mxu0 %v90
    %v931 = vpop.f32.mrb[0].mxu0
    %v932 = vadd.f32 0.0, %v931
    %v933 = vpop.f32.mrb[0].mxu0
    %934 = vmatprep.mubr.f32.mxu0 0.0
    %935 = vmatmul.mubr.f32.gmra.mrb[0].mxu0 %v91
    %v936 = vpop.f32.mrb[0].mxu0
    %v937 = vadd.f32 0.0, %v936
    %v938 = vpop.f32.mrb[0].mxu0
    %939 = vmatprep.mubr.f32.mxu0 0.0
    %940 = vmatmul.mubr.f32.gmra.mrb[0].mxu0 %v92
    %v941 = vpop.f32.mrb[0].mxu0
    %v942 = vadd.f32 0.0, %v941
    %v943 = vpop.f32.mrb[0].mxu0
    %944 = vmatprep.mubr.f32.mxu0 0.0
    %945 = vmatmul.mubr.f32.gmra.mrb[0].mxu0 %v93
    %v946 = vpop.f32.mrb[0].mxu0
    %v947 = vadd.f32 0.0, %v946
    %v948 = vpop.f32.mrb[0].mxu0
    %949 = vmatprep.mubr.f32.mxu0 0.0
    %950 = vmatmul.mubr.f32.gmra.mrb[0].mxu0 %v94
    %v951 = vpop.f32.mrb[0].mxu0
    %v952 = vadd.f32 0.0, %v951
    %v953 = vpop.f32.mrb[0].mxu0
    %954 = vdwg.mxu0
    %v955 = vmul.f32 %v877, 0.9
    %v956 = vmul.f32 %v882, 0.9
    %v957 = vmul.f32 %v887, 0.9
    %v958 = vmul.f32 %v892, 0.9
    %v959 = vmul.f32 %v897, 0.9
    %v960 = vmul.f32 %v902, 0.9
    %v961 = vmul.f32 %v907, 0.9
    %v962 = vmul.f32 %v912, 0.9
    %v963 = vmul.f32 %v917, 0.9
    %v964 = vmul.f32 %v922, 0.9
    %v965 = vmul.f32 %v927, 0.9
    %v966 = vmul.f32 %v932, 0.9
    %v967 = vmul.f32 %v937, 0.9
    %v968 = vmul.f32 %v942, 0.9
    %v969 = vmul.f32 %v947, 0.9
    %v970 = vmul.f32 %v952, 0.9
    %v971 = vadd.f32 %v955, %v440
    %v972 = vadd.f32 %v956, %v441
    %v973 = vadd.f32 %v957, %v442
    %v974 = vadd.f32 %v958, %v443
    %v975 = vadd.f32 %v959, %v444
    %v976 = vadd.f32 %v960, %v445
    %v977 = vadd.f32 %v961, %v446
    %v978 = vadd.f32 %v962, %v447
    %v979 = vadd.f32 %v963, %v448
    %v980 = vadd.f32 %v964, %v449
    %v981 = vadd.f32 %v965, %v450
    %v982 = vadd.f32 %v966, %v451
    %v983 = vadd.f32 %v967, %v452
    %v984 = vadd.f32 %v968, %v453
    %v985 = vadd.f32 %v969, %v454
    %v986 = vadd.f32 %v970, %v455
    %987 = vmatprep.subr.mxu0 0.0
    %988 = vmatpush1.msra.mxu0 %v971
    %989 = vmatprep.subr.mxu0 0.0
    %990 = vmatpush1.msra.mxu0 %v972
    %991 = vmatprep.subr.mxu0 0.0
    %992 = vmatpush1.msra.mxu0 %v973
    %993 = vmatprep.subr.mxu0 0.0
    %994 = vmatpush1.msra.mxu0 %v974
    %995 = vmatprep.subr.mxu0 0.0
    %996 = vmatpush1.msra.mxu0 %v975
    %997 = vmatprep.subr.mxu0 0.0
    %998 = vmatpush1.msra.mxu0 %v976
    %999 = vmatprep.subr.mxu0 0.0
    %1000 = vmatpush1.msra.mxu0 %v977
    %1001 = vmatprep.subr.mxu0 0.0
    %1002 = vmatpush1.msra.mxu0 %v978
    %1003 = vmatprep.subr.mxu0 0.0
    %1004 = vmatpush1.msra.mxu0 %v979
    %1005 = vmatprep.subr.mxu0 0.0
    %1006 = vmatpush1.msra.mxu0 %v980
    %1007 = vmatprep.subr.mxu0 0.0
    %1008 = vmatpush1.msra.mxu0 %v981
    %1009 = vmatprep.subr.mxu0 0.0
    %1010 = vmatpush1.msra.mxu0 %v982
    %1011 = vmatprep.subr.mxu0 0.0
    %1012 = vmatpush1.msra.mxu0 %v983
    %1013 = vmatprep.subr.mxu0 0.0
    %1014 = vmatpush1.msra.mxu0 %v984
    %1015 = vmatprep.subr.mxu0 0.0
    %1016 = vmatpush1.msra.mxu0 %v985
    %1017 = vmatprep.subr.mxu0 0.0
    %1018 = vmatpush1.msra.mxu0 %v986
    %1019 = vmatprep.subr.mxu0 0.0
    %1020 = vmatpush1.msra.mxu0 0.0
    %1021 = vmatprep.subr.mxu0 0.0
    %1022 = vmatpush1.msra.mxu0 0.0
    %1023 = vmatprep.subr.mxu0 0.0
    %1024 = vmatpush1.msra.mxu0 0.0
    %1025 = vmatprep.subr.mxu0 0.0
    %1026 = vmatpush1.msra.mxu0 0.0
    %1027 = vmatprep.subr.mxu0 0.0
    %1028 = vmatpush1.msra.mxu0 0.0
    %1029 = vmatprep.subr.mxu0 0.0
    %1030 = vmatpush1.msra.mxu0 0.0
    %1031 = vmatprep.subr.mxu0 0.0
    %1032 = vmatpush1.msra.mxu0 0.0
    %1033 = vmatprep.subr.mxu0 0.0
    %1034 = vmatpush1.msra.mxu0 0.0
    %1035 = vmatprep.subr.mxu0 0.0
    %1036 = vmatpush1.msra.mxu0 0.0
    %1037 = vmatprep.subr.mxu0 0.0
    %1038 = vmatpush1.msra.mxu0 0.0
    %1039 = vmatprep.subr.mxu0 0.0
    %1040 = vmatpush1.msra.mxu0 0.0
    %1041 = vmatprep.subr.mxu0 0.0
    %1042 = vmatpush1.msra.mxu0 0.0
    %1043 = vmatprep.subr.mxu0 0.0
    %1044 = vmatpush1.msra.mxu0 0.0
    %1045 = vmatprep.subr.mxu0 0.0
    %1046 = vmatpush1.msra.mxu0 0.0
    %1047 = vmatprep.subr.mxu0 0.0
    %1048 = vmatpush1.msra.mxu0 0.0
    %1049 = vmatprep.subr.mxu0 0.0
    %1050 = vmatpush1.msra.mxu0 0.0
    %1051 = vmatprep.mubr.f32.mxu0 0.0
    %1052 = vmatmul.mubr.f32.gmra.mrb[0].mxu0 %v79
    %v1053 = vpop.f32.mrb[0].mxu0
    %v1054 = vadd.f32 0.0, %v1053
    %v1055 = vpop.f32.mrb[0].mxu0
    %1056 = vmatprep.mubr.f32.mxu0 0.0
    %1057 = vmatmul.mubr.f32.gmra.mrb[0].mxu0 %v80
    %v1058 = vpop.f32.mrb[0].mxu0
    %v1059 = vadd.f32 0.0, %v1058
    %v1060 = vpop.f32.mrb[0].mxu0
    %1061 = vmatprep.mubr.f32.mxu0 0.0
    %1062 = vmatmul.mubr.f32.gmra.mrb[0].mxu0 %v81
    %v1063 = vpop.f32.mrb[0].mxu0
    %v1064 = vadd.f32 0.0, %v1063
    %v1065 = vpop.f32.mrb[0].mxu0
    %1066 = vmatprep.mubr.f32.mxu0 0.0
    %1067 = vmatmul.mubr.f32.gmra.mrb[0].mxu0 %v82
    %v1068 = vpop.f32.mrb[0].mxu0
    %v1069 = vadd.f32 0.0, %v1068
    %v1070 = vpop.f32.mrb[0].mxu0
    %1071 = vmatprep.mubr.f32.mxu0 0.0
    %1072 = vmatmul.mubr.f32.gmra.mrb[0].mxu0 %v83
    %v1073 = vpop.f32.mrb[0].mxu0
    %v1074 = vadd.f32 0.0, %v1073
    %v1075 = vpop.f32.mrb[0].mxu0
    %1076 = vmatprep.mubr.f32.mxu0 0.0
    %1077 = vmatmul.mubr.f32.gmra.mrb[0].mxu0 %v84
    %v1078 = vpop.f32.mrb[0].mxu0
    %v1079 = vadd.f32 0.0, %v1078
    %v1080 = vpop.f32.mrb[0].mxu0
    %1081 = vmatprep.mubr.f32.mxu0 0.0
    %1082 = vmatmul.mubr.f32.gmra.mrb[0].mxu0 %v85
    %v1083 = vpop.f32.mrb[0].mxu0
    %v1084 = vadd.f32 0.0, %v1083
    %v1085 = vpop.f32.mrb[0].mxu0
    %1086 = vmatprep.mubr.f32.mxu0 0.0
    %1087 = vmatmul.mubr.f32.gmra.mrb[0].mxu0 %v86
    %v1088 = vpop.f32.mrb[0].mxu0
    %v1089 = vadd.f32 0.0, %v1088
    %v1090 = vpop.f32.mrb[0].mxu0
    %1091 = vmatprep.mubr.f32.mxu0 0.0
    %1092 = vmatmul.mubr.f32.gmra.mrb[0].mxu0 %v87
    %v1093 = vpop.f32.mrb[0].mxu0
    %v1094 = vadd.f32 0.0, %v1093
    %v1095 = vpop.f32.mrb[0].mxu0
    %1096 = vmatprep.mubr.f32.mxu0 0.0
    %1097 = vmatmul.mubr.f32.gmra.mrb[0].mxu0 %v88
    %v1098 = vpop.f32.mrb[0].mxu0
    %v1099 = vadd.f32 0.0, %v1098
    %v1100 = vpop.f32.mrb[0].mxu0
    %1101 = vmatprep.mubr.f32.mxu0 0.0
    %1102 = vmatmul.mubr.f32.gmra.mrb[0].mxu0 %v89
    %v1103 = vpop.f32.mrb[0].mxu0
    %v1104 = vadd.f32 0.0, %v1103
    %v1105 = vpop.f32.mrb[0].mxu0
    %1106 = vmatprep.mubr.f32.mxu0 0.0
    %1107 = vmatmul.mubr.f32.gmra.mrb[0].mxu0 %v90
    %v1108 = vpop.f32.mrb[0].mxu0
    %v1109 = vadd.f32 0.0, %v1108
    %v1110 = vpop.f32.mrb[0].mxu0
    %1111 = vmatprep.mubr.f32.mxu0 0.0
    %1112 = vmatmul.mubr.f32.gmra.mrb[0].mxu0 %v91
    %v1113 = vpop.f32.mrb[0].mxu0
    %v1114 = vadd.f32 0.0, %v1113
    %v1115 = vpop.f32.mrb[0].mxu0
    %1116 = vmatprep.mubr.f32.mxu0 0.0
    %1117 = vmatmul.mubr.f32.gmra.mrb[0].mxu0 %v92
    %v1118 = vpop.f32.mrb[0].mxu0
    %v1119 = vadd.f32 0.0, %v1118
    %v1120 = vpop.f32.mrb[0].mxu0
    %1121 = vmatprep.mubr.f32.mxu0 0.0
    %1122 = vmatmul.mubr.f32.gmra.mrb[0].mxu0 %v93
    %v1123 = vpop.f32.mrb[0].mxu0
    %v1124 = vadd.f32 0.0, %v1123
    %v1125 = vpop.f32.mrb[0].mxu0
    %1126 = vmatprep.mubr.f32.mxu0 0.0
    %1127 = vmatmul.mubr.f32.gmra.mrb[0].mxu0 %v94
    %v1128 = vpop.f32.mrb[0].mxu0
    %v1129 = vadd.f32 0.0, %v1128
    %v1130 = vpop.f32.mrb[0].mxu0
    %1131 = vdwg.mxu0
    %v1132 = vmul.f32 %v1054, 0.9
    %v1133 = vmul.f32 %v1059, 0.9
    %v1134 = vmul.f32 %v1064, 0.9
    %v1135 = vmul.f32 %v1069, 0.9
    %v1136 = vmul.f32 %v1074, 0.9
    %v1137 = vmul.f32 %v1079, 0.9
    %v1138 = vmul.f32 %v1084, 0.9
    %v1139 = vmul.f32 %v1089, 0.9
    %v1140 = vmul.f32 %v1094, 0.9
    %v1141 = vmul.f32 %v1099, 0.9
    %v1142 = vmul.f32 %v1104, 0.9
    %v1143 = vmul.f32 %v1109, 0.9
    %v1144 = vmul.f32 %v1114, 0.9
    %v1145 = vmul.f32 %v1119, 0.9
    %v1146 = vmul.f32 %v1124, 0.9
    %v1147 = vmul.f32 %v1129, 0.9
    %v1148 = vadd.f32 %v1132, %v440
    %v1149 = vadd.f32 %v1133, %v441
    %v1150 = vadd.f32 %v1134, %v442
    %v1151 = vadd.f32 %v1135, %v443
    %v1152 = vadd.f32 %v1136, %v444
    %v1153 = vadd.f32 %v1137, %v445
    %v1154 = vadd.f32 %v1138, %v446
    %v1155 = vadd.f32 %v1139, %v447
    %v1156 = vadd.f32 %v1140, %v448
    %v1157 = vadd.f32 %v1141, %v449
    %v1158 = vadd.f32 %v1142, %v450
    %v1159 = vadd.f32 %v1143, %v451
    %v1160 = vadd.f32 %v1144, %v452
    %v1161 = vadd.f32 %v1145, %v453
    %v1162 = vadd.f32 %v1146, %v454
    %v1163 = vadd.f32 %v1147, %v455
    %1164 = vmatprep.subr.mxu0 0.0
    %1165 = vmatpush1.msra.mxu0 %v1148
    %1166 = vmatprep.subr.mxu0 0.0
    %1167 = vmatpush1.msra.mxu0 %v1149
    %1168 = vmatprep.subr.mxu0 0.0
    %1169 = vmatpush1.msra.mxu0 %v1150
    %1170 = vmatprep.subr.mxu0 0.0
    %1171 = vmatpush1.msra.mxu0 %v1151
    %1172 = vmatprep.subr.mxu0 0.0
    %1173 = vmatpush1.msra.mxu0 %v1152
    %1174 = vmatprep.subr.mxu0 0.0
    %1175 = vmatpush1.msra.mxu0 %v1153
    %1176 = vmatprep.subr.mxu0 0.0
    %1177 = vmatpush1.msra.mxu0 %v1154
    %1178 = vmatprep.subr.mxu0 0.0
    %1179 = vmatpush1.msra.mxu0 %v1155
    %1180 = vmatprep.subr.mxu0 0.0
    %1181 = vmatpush1.msra.mxu0 %v1156
    %1182 = vmatprep.subr.mxu0 0.0
    %1183 = vmatpush1.msra.mxu0 %v1157
    %1184 = vmatprep.subr.mxu0 0.0
    %1185 = vmatpush1.msra.mxu0 %v1158
    %1186 = vmatprep.subr.mxu0 0.0
    %1187 = vmatpush1.msra.mxu0 %v1159
    %1188 = vmatprep.subr.mxu0 0.0
    %1189 = vmatpush1.msra.mxu0 %v1160
    %1190 = vmatprep.subr.mxu0 0.0
    %1191 = vmatpush1.msra.mxu0 %v1161
    %1192 = vmatprep.subr.mxu0 0.0
    %1193 = vmatpush1.msra.mxu0 %v1162
    %1194 = vmatprep.subr.mxu0 0.0
    %1195 = vmatpush1.msra.mxu0 %v1163
    %1196 = vmatprep.subr.mxu0 0.0
    %1197 = vmatpush1.msra.mxu0 0.0
    %1198 = vmatprep.subr.mxu0 0.0
    %1199 = vmatpush1.msra.mxu0 0.0
    %1200 = vmatprep.subr.mxu0 0.0
    %1201 = vmatpush1.msra.mxu0 0.0
    %1202 = vmatprep.subr.mxu0 0.0
    %1203 = vmatpush1.msra.mxu0 0.0
    %1204 = vmatprep.subr.mxu0 0.0
    %1205 = vmatpush1.msra.mxu0 0.0
    %1206 = vmatprep.subr.mxu0 0.0
    %1207 = vmatpush1.msra.mxu0 0.0
    %1208 = vmatprep.subr.mxu0 0.0
    %1209 = vmatpush1.msra.mxu0 0.0
    %1210 = vmatprep.subr.mxu0 0.0
    %1211 = vmatpush1.msra.mxu0 0.0
    %1212 = vmatprep.subr.mxu0 0.0
    %1213 = vmatpush1.msra.mxu0 0.0
    %1214 = vmatprep.subr.mxu0 0.0
    %1215 = vmatpush1.msra.mxu0 0.0
    %1216 = vmatprep.subr.mxu0 0.0
    %1217 = vmatpush1.msra.mxu0 0.0
    %1218 = vmatprep.subr.mxu0 0.0
    %1219 = vmatpush1.msra.mxu0 0.0
    %1220 = vmatprep.subr.mxu0 0.0
    %1221 = vmatpush1.msra.mxu0 0.0
    %1222 = vmatprep.subr.mxu0 0.0
    %1223 = vmatpush1.msra.mxu0 0.0
    %1224 = vmatprep.subr.mxu0 0.0
    %1225 = vmatpush1.msra.mxu0 0.0
    %1226 = vmatprep.subr.mxu0 0.0
    %1227 = vmatpush1.msra.mxu0 0.0
    %1228 = vmatprep.mubr.f32.mxu0 0.0
    %1229 = vmatmul.mubr.f32.gmra.mrb[0].mxu0 %v79
    %v1230 = vpop.f32.mrb[0].mxu0
    %v1231 = vadd.f32 0.0, %v1230
    %v1232 = vpop.f32.mrb[0].mxu0
    %1233 = vmatprep.mubr.f32.mxu0 0.0
    %1234 = vmatmul.mubr.f32.gmra.mrb[0].mxu0 %v80
    %v1235 = vpop.f32.mrb[0].mxu0
    %v1236 = vadd.f32 0.0, %v1235
    %v1237 = vpop.f32.mrb[0].mxu0
    %1238 = vmatprep.mubr.f32.mxu0 0.0
    %1239 = vmatmul.mubr.f32.gmra.mrb[0].mxu0 %v81
    %v1240 = vpop.f32.mrb[0].mxu0
    %v1241 = vadd.f32 0.0, %v1240
    %v1242 = vpop.f32.mrb[0].mxu0
    %1243 = vmatprep.mubr.f32.mxu0 0.0
    %1244 = vmatmul.mubr.f32.gmra.mrb[0].mxu0 %v82
    %v1245 = vpop.f32.mrb[0].mxu0
    %v1246 = vadd.f32 0.0, %v1245
    %v1247 = vpop.f32.mrb[0].mxu0
    %1248 = vmatprep.mubr.f32.mxu0 0.0
    %1249 = vmatmul.mubr.f32.gmra.mrb[0].mxu0 %v83
    %v1250 = vpop.f32.mrb[0].mxu0
    %v1251 = vadd.f32 0.0, %v1250
    %v1252 = vpop.f32.mrb[0].mxu0
    %1253 = vmatprep.mubr.f32.mxu0 0.0
    %1254 = vmatmul.mubr.f32.gmra.mrb[0].mxu0 %v84
    %v1255 = vpop.f32.mrb[0].mxu0
    %v1256 = vadd.f32 0.0, %v1255
    %v1257 = vpop.f32.mrb[0].mxu0
    %1258 = vmatprep.mubr.f32.mxu0 0.0
    %1259 = vmatmul.mubr.f32.gmra.mrb[0].mxu0 %v85
    %v1260 = vpop.f32.mrb[0].mxu0
    %v1261 = vadd.f32 0.0, %v1260
    %v1262 = vpop.f32.mrb[0].mxu0
    %1263 = vmatprep.mubr.f32.mxu0 0.0
    %1264 = vmatmul.mubr.f32.gmra.mrb[0].mxu0 %v86
    %v1265 = vpop.f32.mrb[0].mxu0
    %v1266 = vadd.f32 0.0, %v1265
    %v1267 = vpop.f32.mrb[0].mxu0
    %1268 = vmatprep.mubr.f32.mxu0 0.0
    %1269 = vmatmul.mubr.f32.gmra.mrb[0].mxu0 %v87
    %v1270 = vpop.f32.mrb[0].mxu0
    %v1271 = vadd.f32 0.0, %v1270
    %v1272 = vpop.f32.mrb[0].mxu0
    %1273 = vmatprep.mubr.f32.mxu0 0.0
    %1274 = vmatmul.mubr.f32.gmra.mrb[0].mxu0 %v88
    %v1275 = vpop.f32.mrb[0].mxu0
    %v1276 = vadd.f32 0.0, %v1275
    %v1277 = vpop.f32.mrb[0].mxu0
    %1278 = vmatprep.mubr.f32.mxu0 0.0
    %1279 = vmatmul.mubr.f32.gmra.mrb[0].mxu0 %v89
    %v1280 = vpop.f32.mrb[0].mxu0
    %v1281 = vadd.f32 0.0, %v1280
    %v1282 = vpop.f32.mrb[0].mxu0
    %1283 = vmatprep.mubr.f32.mxu0 0.0
    %1284 = vmatmul.mubr.f32.gmra.mrb[0].mxu0 %v90
    %v1285 = vpop.f32.mrb[0].mxu0
    %v1286 = vadd.f32 0.0, %v1285
    %v1287 = vpop.f32.mrb[0].mxu0
    %1288 = vmatprep.mubr.f32.mxu0 0.0
    %1289 = vmatmul.mubr.f32.gmra.mrb[0].mxu0 %v91
    %v1290 = vpop.f32.mrb[0].mxu0
    %v1291 = vadd.f32 0.0, %v1290
    %v1292 = vpop.f32.mrb[0].mxu0
    %1293 = vmatprep.mubr.f32.mxu0 0.0
    %1294 = vmatmul.mubr.f32.gmra.mrb[0].mxu0 %v92
    %v1295 = vpop.f32.mrb[0].mxu0
    %v1296 = vadd.f32 0.0, %v1295
    %v1297 = vpop.f32.mrb[0].mxu0
    %1298 = vmatprep.mubr.f32.mxu0 0.0
    %1299 = vmatmul.mubr.f32.gmra.mrb[0].mxu0 %v93
    %v1300 = vpop.f32.mrb[0].mxu0
    %v1301 = vadd.f32 0.0, %v1300
    %v1302 = vpop.f32.mrb[0].mxu0
    %1303 = vmatprep.mubr.f32.mxu0 0.0
    %1304 = vmatmul.mubr.f32.gmra.mrb[0].mxu0 %v94
    %v1305 = vpop.f32.mrb[0].mxu0
    %v1306 = vadd.f32 0.0, %v1305
    %v1307 = vpop.f32.mrb[0].mxu0
    %1308 = vdwg.mxu0
    %v1309 = vmul.f32 %v1231, 0.9
    %v1310 = vmul.f32 %v1236, 0.9
    %v1311 = vmul.f32 %v1241, 0.9
    %v1312 = vmul.f32 %v1246, 0.9
    %v1313 = vmul.f32 %v1251, 0.9
    %v1314 = vmul.f32 %v1256, 0.9
    %v1315 = vmul.f32 %v1261, 0.9
    %v1316 = vmul.f32 %v1266, 0.9
    %v1317 = vmul.f32 %v1271, 0.9
    %v1318 = vmul.f32 %v1276, 0.9
    %v1319 = vmul.f32 %v1281, 0.9
    %v1320 = vmul.f32 %v1286, 0.9
    %v1321 = vmul.f32 %v1291, 0.9
    %v1322 = vmul.f32 %v1296, 0.9
    %v1323 = vmul.f32 %v1301, 0.9
    %v1324 = vmul.f32 %v1306, 0.9
    %v1325 = vadd.f32 %v1309, %v440
    %v1326 = vadd.f32 %v1310, %v441
    %v1327 = vadd.f32 %v1311, %v442
    %v1328 = vadd.f32 %v1312, %v443
    %v1329 = vadd.f32 %v1313, %v444
    %v1330 = vadd.f32 %v1314, %v445
    %v1331 = vadd.f32 %v1315, %v446
    %v1332 = vadd.f32 %v1316, %v447
    %v1333 = vadd.f32 %v1317, %v448
    %v1334 = vadd.f32 %v1318, %v449
    %v1335 = vadd.f32 %v1319, %v450
    %v1336 = vadd.f32 %v1320, %v451
    %v1337 = vadd.f32 %v1321, %v452
    %v1338 = vadd.f32 %v1322, %v453
    %v1339 = vadd.f32 %v1323, %v454
    %v1340 = vadd.f32 %v1324, %v455
    %1341 = vmatprep.subr.mxu0 0.0
    %1342 = vmatpush1.msra.mxu0 %v1325
    %1343 = vmatprep.subr.mxu0 0.0
    %1344 = vmatpush1.msra.mxu0 %v1326
    %1345 = vmatprep.subr.mxu0 0.0
    %1346 = vmatpush1.msra.mxu0 %v1327
    %1347 = vmatprep.subr.mxu0 0.0
    %1348 = vmatpush1.msra.mxu0 %v1328
    %1349 = vmatprep.subr.mxu0 0.0
    %1350 = vmatpush1.msra.mxu0 %v1329
    %1351 = vmatprep.subr.mxu0 0.0
    %1352 = vmatpush1.msra.mxu0 %v1330
    %1353 = vmatprep.subr.mxu0 0.0
    %1354 = vmatpush1.msra.mxu0 %v1331
    %1355 = vmatprep.subr.mxu0 0.0
    %1356 = vmatpush1.msra.mxu0 %v1332
    %1357 = vmatprep.subr.mxu0 0.0
    %1358 = vmatpush1.msra.mxu0 %v1333
    %1359 = vmatprep.subr.mxu0 0.0
    %1360 = vmatpush1.msra.mxu0 %v1334
    %1361 = vmatprep.subr.mxu0 0.0
    %1362 = vmatpush1.msra.mxu0 %v1335
    %1363 = vmatprep.subr.mxu0 0.0
    %1364 = vmatpush1.msra.mxu0 %v1336
    %1365 = vmatprep.subr.mxu0 0.0
    %1366 = vmatpush1.msra.mxu0 %v1337
    %1367 = vmatprep.subr.mxu0 0.0
    %1368 = vmatpush1.msra.mxu0 %v1338
    %1369 = vmatprep.subr.mxu0 0.0
    %1370 = vmatpush1.msra.mxu0 %v1339
    %1371 = vmatprep.subr.mxu0 0.0
    %1372 = vmatpush1.msra.mxu0 %v1340
    %1373 = vmatprep.subr.mxu0 0.0
    %1374 = vmatpush1.msra.mxu0 0.0
    %1375 = vmatprep.subr.mxu0 0.0
    %1376 = vmatpush1.msra.mxu0 0.0
    %1377 = vmatprep.subr.mxu0 0.0
    %1378 = vmatpush1.msra.mxu0 0.0
    %1379 = vmatprep.subr.mxu0 0.0
    %1380 = vmatpush1.msra.mxu0 0.0
    %1381 = vmatprep.subr.mxu0 0.0
    %1382 = vmatpush1.msra.mxu0 0.0
    %1383 = vmatprep.subr.mxu0 0.0
    %1384 = vmatpush1.msra.mxu0 0.0
    %1385 = vmatprep.subr.mxu0 0.0
    %1386 = vmatpush1.msra.mxu0 0.0
    %1387 = vmatprep.subr.mxu0 0.0
    %1388 = vmatpush1.msra.mxu0 0.0
    %1389 = vmatprep.subr.mxu0 0.0
    %1390 = vmatpush1.msra.mxu0 0.0
    %1391 = vmatprep.subr.mxu0 0.0
    %1392 = vmatpush1.msra.mxu0 0.0
    %1393 = vmatprep.subr.mxu0 0.0
    %1394 = vmatpush1.msra.mxu0 0.0
    %1395 = vmatprep.subr.mxu0 0.0
    %1396 = vmatpush1.msra.mxu0 0.0
    %1397 = vmatprep.subr.mxu0 0.0
    %1398 = vmatpush1.msra.mxu0 0.0
    %1399 = vmatprep.subr.mxu0 0.0
    %1400 = vmatpush1.msra.mxu0 0.0
    %1401 = vmatprep.subr.mxu0 0.0
    %1402 = vmatpush1.msra.mxu0 0.0
    %1403 = vmatprep.subr.mxu0 0.0
    %1404 = vmatpush1.msra.mxu0 0.0
    %1405 = vmatprep.mubr.f32.mxu0 0.0
    %1406 = vmatmul.mubr.f32.gmra.mrb[0].mxu0 %v79
    %v1407 = vpop.f32.mrb[0].mxu0
    %v1408 = vadd.f32 0.0, %v1407
    %v1409 = vpop.f32.mrb[0].mxu0
    %1410 = vmatprep.mubr.f32.mxu0 0.0
    %1411 = vmatmul.mubr.f32.gmra.mrb[0].mxu0 %v80
    %v1412 = vpop.f32.mrb[0].mxu0
    %v1413 = vadd.f32 0.0, %v1412
    %v1414 = vpop.f32.mrb[0].mxu0
    %1415 = vmatprep.mubr.f32.mxu0 0.0
    %1416 = vmatmul.mubr.f32.gmra.mrb[0].mxu0 %v81
    %v1417 = vpop.f32.mrb[0].mxu0
    %v1418 = vadd.f32 0.0, %v1417
    %v1419 = vpop.f32.mrb[0].mxu0
    %1420 = vmatprep.mubr.f32.mxu0 0.0
    %1421 = vmatmul.mubr.f32.gmra.mrb[0].mxu0 %v82
    %v1422 = vpop.f32.mrb[0].mxu0
    %v1423 = vadd.f32 0.0, %v1422
    %v1424 = vpop.f32.mrb[0].mxu0
    %1425 = vmatprep.mubr.f32.mxu0 0.0
    %1426 = vmatmul.mubr.f32.gmra.mrb[0].mxu0 %v83
    %v1427 = vpop.f32.mrb[0].mxu0
    %v1428 = vadd.f32 0.0, %v1427
    %v1429 = vpop.f32.mrb[0].mxu0
    %1430 = vmatprep.mubr.f32.mxu0 0.0
    %1431 = vmatmul.mubr.f32.gmra.mrb[0].mxu0 %v84
    %v1432 = vpop.f32.mrb[0].mxu0
    %v1433 = vadd.f32 0.0, %v1432
    %v1434 = vpop.f32.mrb[0].mxu0
    %1435 = vmatprep.mubr.f32.mxu0 0.0
    %1436 = vmatmul.mubr.f32.gmra.mrb[0].mxu0 %v85
    %v1437 = vpop.f32.mrb[0].mxu0
    %v1438 = vadd.f32 0.0, %v1437
    %v1439 = vpop.f32.mrb[0].mxu0
    %1440 = vmatprep.mubr.f32.mxu0 0.0
    %1441 = vmatmul.mubr.f32.gmra.mrb[0].mxu0 %v86
    %v1442 = vpop.f32.mrb[0].mxu0
    %v1443 = vadd.f32 0.0, %v1442
    %v1444 = vpop.f32.mrb[0].mxu0
    %1445 = vmatprep.mubr.f32.mxu0 0.0
    %1446 = vmatmul.mubr.f32.gmra.mrb[0].mxu0 %v87
    %v1447 = vpop.f32.mrb[0].mxu0
    %v1448 = vadd.f32 0.0, %v1447
    %v1449 = vpop.f32.mrb[0].mxu0
    %1450 = vmatprep.mubr.f32.mxu0 0.0
    %1451 = vmatmul.mubr.f32.gmra.mrb[0].mxu0 %v88
    %v1452 = vpop.f32.mrb[0].mxu0
    %v1453 = vadd.f32 0.0, %v1452
    %v1454 = vpop.f32.mrb[0].mxu0
    %1455 = vmatprep.mubr.f32.mxu0 0.0
    %1456 = vmatmul.mubr.f32.gmra.mrb[0].mxu0 %v89
    %v1457 = vpop.f32.mrb[0].mxu0
    %v1458 = vadd.f32 0.0, %v1457
    %v1459 = vpop.f32.mrb[0].mxu0
    %1460 = vmatprep.mubr.f32.mxu0 0.0
    %1461 = vmatmul.mubr.f32.gmra.mrb[0].mxu0 %v90
    %v1462 = vpop.f32.mrb[0].mxu0
    %v1463 = vadd.f32 0.0, %v1462
    %v1464 = vpop.f32.mrb[0].mxu0
    %1465 = vmatprep.mubr.f32.mxu0 0.0
    %1466 = vmatmul.mubr.f32.gmra.mrb[0].mxu0 %v91
    %v1467 = vpop.f32.mrb[0].mxu0
    %v1468 = vadd.f32 0.0, %v1467
    %v1469 = vpop.f32.mrb[0].mxu0
    %1470 = vmatprep.mubr.f32.mxu0 0.0
    %1471 = vmatmul.mubr.f32.gmra.mrb[0].mxu0 %v92
    %v1472 = vpop.f32.mrb[0].mxu0
    %v1473 = vadd.f32 0.0, %v1472
    %v1474 = vpop.f32.mrb[0].mxu0
    %1475 = vmatprep.mubr.f32.mxu0 0.0
    %1476 = vmatmul.mubr.f32.gmra.mrb[0].mxu0 %v93
    %v1477 = vpop.f32.mrb[0].mxu0
    %v1478 = vadd.f32 0.0, %v1477
    %v1479 = vpop.f32.mrb[0].mxu0
    %1480 = vmatprep.mubr.f32.mxu0 0.0
    %1481 = vmatmul.mubr.f32.gmra.mrb[0].mxu0 %v94
    %v1482 = vpop.f32.mrb[0].mxu0
    %v1483 = vadd.f32 0.0, %v1482
    %v1484 = vpop.f32.mrb[0].mxu0
    %1485 = vdwg.mxu0
    %v1486 = vmul.f32 %v1408, 0.9
    %v1487 = vmul.f32 %v1413, 0.9
    %v1488 = vmul.f32 %v1418, 0.9
    %v1489 = vmul.f32 %v1423, 0.9
    %v1490 = vmul.f32 %v1428, 0.9
    %v1491 = vmul.f32 %v1433, 0.9
    %v1492 = vmul.f32 %v1438, 0.9
    %v1493 = vmul.f32 %v1443, 0.9
    %v1494 = vmul.f32 %v1448, 0.9
    %v1495 = vmul.f32 %v1453, 0.9
    %v1496 = vmul.f32 %v1458, 0.9
    %v1497 = vmul.f32 %v1463, 0.9
    %v1498 = vmul.f32 %v1468, 0.9
    %v1499 = vmul.f32 %v1473, 0.9
    %v1500 = vmul.f32 %v1478, 0.9
    %v1501 = vmul.f32 %v1483, 0.9
    %v1502 = vadd.f32 %v1486, %v440
    %v1503 = vadd.f32 %v1487, %v441
    %v1504 = vadd.f32 %v1488, %v442
    %v1505 = vadd.f32 %v1489, %v443
    %v1506 = vadd.f32 %v1490, %v444
    %v1507 = vadd.f32 %v1491, %v445
    %v1508 = vadd.f32 %v1492, %v446
    %v1509 = vadd.f32 %v1493, %v447
    %v1510 = vadd.f32 %v1494, %v448
    %v1511 = vadd.f32 %v1495, %v449
    %v1512 = vadd.f32 %v1496, %v450
    %v1513 = vadd.f32 %v1497, %v451
    %v1514 = vadd.f32 %v1498, %v452
    %v1515 = vadd.f32 %v1499, %v453
    %v1516 = vadd.f32 %v1500, %v454
    %v1517 = vadd.f32 %v1501, %v455
    %1518 = vmatprep.subr.mxu0 0.0
    %1519 = vmatpush1.msra.mxu0 %v1502
    %1520 = vmatprep.subr.mxu0 0.0
    %1521 = vmatpush1.msra.mxu0 %v1503
    %1522 = vmatprep.subr.mxu0 0.0
    %1523 = vmatpush1.msra.mxu0 %v1504
    %1524 = vmatprep.subr.mxu0 0.0
    %1525 = vmatpush1.msra.mxu0 %v1505
    %1526 = vmatprep.subr.mxu0 0.0
    %1527 = vmatpush1.msra.mxu0 %v1506
    %1528 = vmatprep.subr.mxu0 0.0
    %1529 = vmatpush1.msra.mxu0 %v1507
    %1530 = vmatprep.subr.mxu0 0.0
    %1531 = vmatpush1.msra.mxu0 %v1508
    %1532 = vmatprep.subr.mxu0 0.0
    %1533 = vmatpush1.msra.mxu0 %v1509
    %1534 = vmatprep.subr.mxu0 0.0
    %1535 = vmatpush1.msra.mxu0 %v1510
    %1536 = vmatprep.subr.mxu0 0.0
    %1537 = vmatpush1.msra.mxu0 %v1511
    %1538 = vmatprep.subr.mxu0 0.0
    %1539 = vmatpush1.msra.mxu0 %v1512
    %1540 = vmatprep.subr.mxu0 0.0
    %1541 = vmatpush1.msra.mxu0 %v1513
    %1542 = vmatprep.subr.mxu0 0.0
    %1543 = vmatpush1.msra.mxu0 %v1514
    %1544 = vmatprep.subr.mxu0 0.0
    %1545 = vmatpush1.msra.mxu0 %v1515
    %1546 = vmatprep.subr.mxu0 0.0
    %1547 = vmatpush1.msra.mxu0 %v1516
    %1548 = vmatprep.subr.mxu0 0.0
    %1549 = vmatpush1.msra.mxu0 %v1517
    %1550 = vmatprep.subr.mxu0 0.0
    %1551 = vmatpush1.msra.mxu0 0.0
    %1552 = vmatprep.subr.mxu0 0.0
    %1553 = vmatpush1.msra.mxu0 0.0
    %1554 = vmatprep.subr.mxu0 0.0
    %1555 = vmatpush1.msra.mxu0 0.0
    %1556 = vmatprep.subr.mxu0 0.0
    %1557 = vmatpush1.msra.mxu0 0.0
    %1558 = vmatprep.subr.mxu0 0.0
    %1559 = vmatpush1.msra.mxu0 0.0
    %1560 = vmatprep.subr.mxu0 0.0
    %1561 = vmatpush1.msra.mxu0 0.0
    %1562 = vmatprep.subr.mxu0 0.0
    %1563 = vmatpush1.msra.mxu0 0.0
    %1564 = vmatprep.subr.mxu0 0.0
    %1565 = vmatpush1.msra.mxu0 0.0
    %1566 = vmatprep.subr.mxu0 0.0
    %1567 = vmatpush1.msra.mxu0 0.0
    %1568 = vmatprep.subr.mxu0 0.0
    %1569 = vmatpush1.msra.mxu0 0.0
    %1570 = vmatprep.subr.mxu0 0.0
    %1571 = vmatpush1.msra.mxu0 0.0
    %1572 = vmatprep.subr.mxu0 0.0
    %1573 = vmatpush1.msra.mxu0 0.0
    %1574 = vmatprep.subr.mxu0 0.0
    %1575 = vmatpush1.msra.mxu0 0.0
    %1576 = vmatprep.subr.mxu0 0.0
    %1577 = vmatpush1.msra.mxu0 0.0
    %1578 = vmatprep.subr.mxu0 0.0
    %1579 = vmatpush1.msra.mxu0 0.0
    %1580 = vmatprep.subr.mxu0 0.0
    %1581 = vmatpush1.msra.mxu0 0.0
    %1582 = vmatprep.mubr.f32.mxu0 0.0
    %1583 = vmatmul.mubr.f32.gmra.mrb[0].mxu0 %v79
    %v1584 = vpop.f32.mrb[0].mxu0
    %v1585 = vadd.f32 0.0, %v1584
    %v1586 = vpop.f32.mrb[0].mxu0
    %1587 = vmatprep.mubr.f32.mxu0 0.0
    %1588 = vmatmul.mubr.f32.gmra.mrb[0].mxu0 %v80
    %v1589 = vpop.f32.mrb[0].mxu0
    %v1590 = vadd.f32 0.0, %v1589
    %v1591 = vpop.f32.mrb[0].mxu0
    %1592 = vmatprep.mubr.f32.mxu0 0.0
    %1593 = vmatmul.mubr.f32.gmra.mrb[0].mxu0 %v81
    %v1594 = vpop.f32.mrb[0].mxu0
    %v1595 = vadd.f32 0.0, %v1594
    %v1596 = vpop.f32.mrb[0].mxu0
    %1597 = vmatprep.mubr.f32.mxu0 0.0
    %1598 = vmatmul.mubr.f32.gmra.mrb[0].mxu0 %v82
    %v1599 = vpop.f32.mrb[0].mxu0
    %v1600 = vadd.f32 0.0, %v1599
    %v1601 = vpop.f32.mrb[0].mxu0
    %1602 = vmatprep.mubr.f32.mxu0 0.0
    %1603 = vmatmul.mubr.f32.gmra.mrb[0].mxu0 %v83
    %v1604 = vpop.f32.mrb[0].mxu0
    %v1605 = vadd.f32 0.0, %v1604
    %v1606 = vpop.f32.mrb[0].mxu0
    %1607 = vmatprep.mubr.f32.mxu0 0.0
    %1608 = vmatmul.mubr.f32.gmra.mrb[0].mxu0 %v84
    %v1609 = vpop.f32.mrb[0].mxu0
    %v1610 = vadd.f32 0.0, %v1609
    %v1611 = vpop.f32.mrb[0].mxu0
    %1612 = vmatprep.mubr.f32.mxu0 0.0
    %1613 = vmatmul.mubr.f32.gmra.mrb[0].mxu0 %v85
    %v1614 = vpop.f32.mrb[0].mxu0
    %v1615 = vadd.f32 0.0, %v1614
    %v1616 = vpop.f32.mrb[0].mxu0
    %1617 = vmatprep.mubr.f32.mxu0 0.0
    %1618 = vmatmul.mubr.f32.gmra.mrb[0].mxu0 %v86
    %v1619 = vpop.f32.mrb[0].mxu0
    %v1620 = vadd.f32 0.0, %v1619
    %v1621 = vpop.f32.mrb[0].mxu0
    %1622 = vmatprep.mubr.f32.mxu0 0.0
    %1623 = vmatmul.mubr.f32.gmra.mrb[0].mxu0 %v87
    %v1624 = vpop.f32.mrb[0].mxu0
    %v1625 = vadd.f32 0.0, %v1624
    %v1626 = vpop.f32.mrb[0].mxu0
    %1627 = vmatprep.mubr.f32.mxu0 0.0
    %1628 = vmatmul.mubr.f32.gmra.mrb[0].mxu0 %v88
    %v1629 = vpop.f32.mrb[0].mxu0
    %v1630 = vadd.f32 0.0, %v1629
    %v1631 = vpop.f32.mrb[0].mxu0
    %1632 = vmatprep.mubr.f32.mxu0 0.0
    %1633 = vmatmul.mubr.f32.gmra.mrb[0].mxu0 %v89
    %v1634 = vpop.f32.mrb[0].mxu0
    %v1635 = vadd.f32 0.0, %v1634
    %v1636 = vpop.f32.mrb[0].mxu0
    %1637 = vmatprep.mubr.f32.mxu0 0.0
    %1638 = vmatmul.mubr.f32.gmra.mrb[0].mxu0 %v90
    %v1639 = vpop.f32.mrb[0].mxu0
    %v1640 = vadd.f32 0.0, %v1639
    %v1641 = vpop.f32.mrb[0].mxu0
    %1642 = vmatprep.mubr.f32.mxu0 0.0
    %1643 = vmatmul.mubr.f32.gmra.mrb[0].mxu0 %v91
    %v1644 = vpop.f32.mrb[0].mxu0
    %v1645 = vadd.f32 0.0, %v1644
    %v1646 = vpop.f32.mrb[0].mxu0
    %1647 = vmatprep.mubr.f32.mxu0 0.0
    %1648 = vmatmul.mubr.f32.gmra.mrb[0].mxu0 %v92
    %v1649 = vpop.f32.mrb[0].mxu0
    %v1650 = vadd.f32 0.0, %v1649
    %v1651 = vpop.f32.mrb[0].mxu0
    %1652 = vmatprep.mubr.f32.mxu0 0.0
    %1653 = vmatmul.mubr.f32.gmra.mrb[0].mxu0 %v93
    %v1654 = vpop.f32.mrb[0].mxu0
    %v1655 = vadd.f32 0.0, %v1654
    %v1656 = vpop.f32.mrb[0].mxu0
    %1657 = vmatprep.mubr.f32.mxu0 0.0
    %1658 = vmatmul.mubr.f32.gmra.mrb[0].mxu0 %v94
    %v1659 = vpop.f32.mrb[0].mxu0
    %v1660 = vadd.f32 0.0, %v1659
    %v1661 = vpop.f32.mrb[0].mxu0
    %1662 = vdwg.mxu0
    %v1663 = vmul.f32 %v1585, 0.9
    %v1664 = vmul.f32 %v1590, 0.9
    %v1665 = vmul.f32 %v1595, 0.9
    %v1666 = vmul.f32 %v1600, 0.9
    %v1667 = vmul.f32 %v1605, 0.9
    %v1668 = vmul.f32 %v1610, 0.9
    %v1669 = vmul.f32 %v1615, 0.9
    %v1670 = vmul.f32 %v1620, 0.9
    %v1671 = vmul.f32 %v1625, 0.9
    %v1672 = vmul.f32 %v1630, 0.9
    %v1673 = vmul.f32 %v1635, 0.9
    %v1674 = vmul.f32 %v1640, 0.9
    %v1675 = vmul.f32 %v1645, 0.9
    %v1676 = vmul.f32 %v1650, 0.9
    %v1677 = vmul.f32 %v1655, 0.9
    %v1678 = vmul.f32 %v1660, 0.9
    %v1679 = vadd.f32 %v1663, %v440
    %v1680 = vadd.f32 %v1664, %v441
    %v1681 = vadd.f32 %v1665, %v442
    %v1682 = vadd.f32 %v1666, %v443
    %v1683 = vadd.f32 %v1667, %v444
    %v1684 = vadd.f32 %v1668, %v445
    %v1685 = vadd.f32 %v1669, %v446
    %v1686 = vadd.f32 %v1670, %v447
    %v1687 = vadd.f32 %v1671, %v448
    %v1688 = vadd.f32 %v1672, %v449
    %v1689 = vadd.f32 %v1673, %v450
    %v1690 = vadd.f32 %v1674, %v451
    %v1691 = vadd.f32 %v1675, %v452
    %v1692 = vadd.f32 %v1676, %v453
    %v1693 = vadd.f32 %v1677, %v454
    %v1694 = vadd.f32 %v1678, %v455
    %1695 = vmatprep.subr.mxu0 0.0
    %1696 = vmatpush1.msra.mxu0 %v1679
    %1697 = vmatprep.subr.mxu0 0.0
    %1698 = vmatpush1.msra.mxu0 %v1680
    %1699 = vmatprep.subr.mxu0 0.0
    %1700 = vmatpush1.msra.mxu0 %v1681
    %1701 = vmatprep.subr.mxu0 0.0
    %1702 = vmatpush1.msra.mxu0 %v1682
    %1703 = vmatprep.subr.mxu0 0.0
    %1704 = vmatpush1.msra.mxu0 %v1683
    %1705 = vmatprep.subr.mxu0 0.0
    %1706 = vmatpush1.msra.mxu0 %v1684
    %1707 = vmatprep.subr.mxu0 0.0
    %1708 = vmatpush1.msra.mxu0 %v1685
    %1709 = vmatprep.subr.mxu0 0.0
    %1710 = vmatpush1.msra.mxu0 %v1686
    %1711 = vmatprep.subr.mxu0 0.0
    %1712 = vmatpush1.msra.mxu0 %v1687
    %1713 = vmatprep.subr.mxu0 0.0
    %1714 = vmatpush1.msra.mxu0 %v1688
    %1715 = vmatprep.subr.mxu0 0.0
    %1716 = vmatpush1.msra.mxu0 %v1689
    %1717 = vmatprep.subr.mxu0 0.0
    %1718 = vmatpush1.msra.mxu0 %v1690
    %1719 = vmatprep.subr.mxu0 0.0
    %1720 = vmatpush1.msra.mxu0 %v1691
    %1721 = vmatprep.subr.mxu0 0.0
    %1722 = vmatpush1.msra.mxu0 %v1692
    %1723 = vmatprep.subr.mxu0 0.0
    %1724 = vmatpush1.msra.mxu0 %v1693
    %1725 = vmatprep.subr.mxu0 0.0
    %1726 = vmatpush1.msra.mxu0 %v1694
    %1727 = vmatprep.subr.mxu0 0.0
    %1728 = vmatpush1.msra.mxu0 0.0
    %1729 = vmatprep.subr.mxu0 0.0
    %1730 = vmatpush1.msra.mxu0 0.0
    %1731 = vmatprep.subr.mxu0 0.0
    %1732 = vmatpush1.msra.mxu0 0.0
    %1733 = vmatprep.subr.mxu0 0.0
    %1734 = vmatpush1.msra.mxu0 0.0
    %1735 = vmatprep.subr.mxu0 0.0
    %1736 = vmatpush1.msra.mxu0 0.0
    %1737 = vmatprep.subr.mxu0 0.0
    %1738 = vmatpush1.msra.mxu0 0.0
    %1739 = vmatprep.subr.mxu0 0.0
    %1740 = vmatpush1.msra.mxu0 0.0
    %1741 = vmatprep.subr.mxu0 0.0
    %1742 = vmatpush1.msra.mxu0 0.0
    %1743 = vmatprep.subr.mxu0 0.0
    %1744 = vmatpush1.msra.mxu0 0.0
    %1745 = vmatprep.subr.mxu0 0.0
    %1746 = vmatpush1.msra.mxu0 0.0
    %1747 = vmatprep.subr.mxu0 0.0
    %1748 = vmatpush1.msra.mxu0 0.0
    %1749 = vmatprep.subr.mxu0 0.0
    %1750 = vmatpush1.msra.mxu0 0.0
    %1751 = vmatprep.subr.mxu0 0.0
    %1752 = vmatpush1.msra.mxu0 0.0
    %1753 = vmatprep.subr.mxu0 0.0
    %1754 = vmatpush1.msra.mxu0 0.0
    %1755 = vmatprep.subr.mxu0 0.0
    %1756 = vmatpush1.msra.mxu0 0.0
    %1757 = vmatprep.subr.mxu0 0.0
    %1758 = vmatpush1.msra.mxu0 0.0
    %1759 = vmatprep.mubr.f32.mxu0 0.0
    %1760 = vmatmul.mubr.f32.gmra.mrb[0].mxu0 %v79
    %v1761 = vpop.f32.mrb[0].mxu0
    %v1762 = vadd.f32 0.0, %v1761
    %v1763 = vpop.f32.mrb[0].mxu0
    %1764 = vmatprep.mubr.f32.mxu0 0.0
    %1765 = vmatmul.mubr.f32.gmra.mrb[0].mxu0 %v80
    %v1766 = vpop.f32.mrb[0].mxu0
    %v1767 = vadd.f32 0.0, %v1766
    %v1768 = vpop.f32.mrb[0].mxu0
    %1769 = vmatprep.mubr.f32.mxu0 0.0
    %1770 = vmatmul.mubr.f32.gmra.mrb[0].mxu0 %v81
    %v1771 = vpop.f32.mrb[0].mxu0
    %v1772 = vadd.f32 0.0, %v1771
    %v1773 = vpop.f32.mrb[0].mxu0
    %1774 = vmatprep.mubr.f32.mxu0 0.0
    %1775 = vmatmul.mubr.f32.gmra.mrb[0].mxu0 %v82
    %v1776 = vpop.f32.mrb[0].mxu0
    %v1777 = vadd.f32 0.0, %v1776
    %v1778 = vpop.f32.mrb[0].mxu0
    %1779 = vmatprep.mubr.f32.mxu0 0.0
    %1780 = vmatmul.mubr.f32.gmra.mrb[0].mxu0 %v83
    %v1781 = vpop.f32.mrb[0].mxu0
    %v1782 = vadd.f32 0.0, %v1781
    %v1783 = vpop.f32.mrb[0].mxu0
    %1784 = vmatprep.mubr.f32.mxu0 0.0
    %1785 = vmatmul.mubr.f32.gmra.mrb[0].mxu0 %v84
    %v1786 = vpop.f32.mrb[0].mxu0
    %v1787 = vadd.f32 0.0, %v1786
    %v1788 = vpop.f32.mrb[0].mxu0
    %1789 = vmatprep.mubr.f32.mxu0 0.0
    %1790 = vmatmul.mubr.f32.gmra.mrb[0].mxu0 %v85
    %v1791 = vpop.f32.mrb[0].mxu0
    %v1792 = vadd.f32 0.0, %v1791
    %v1793 = vpop.f32.mrb[0].mxu0
    %1794 = vmatprep.mubr.f32.mxu0 0.0
    %1795 = vmatmul.mubr.f32.gmra.mrb[0].mxu0 %v86
    %v1796 = vpop.f32.mrb[0].mxu0
    %v1797 = vadd.f32 0.0, %v1796
    %v1798 = vpop.f32.mrb[0].mxu0
    %1799 = vmatprep.mubr.f32.mxu0 0.0
    %1800 = vmatmul.mubr.f32.gmra.mrb[0].mxu0 %v87
    %v1801 = vpop.f32.mrb[0].mxu0
    %v1802 = vadd.f32 0.0, %v1801
    %v1803 = vpop.f32.mrb[0].mxu0
    %1804 = vmatprep.mubr.f32.mxu0 0.0
    %1805 = vmatmul.mubr.f32.gmra.mrb[0].mxu0 %v88
    %v1806 = vpop.f32.mrb[0].mxu0
    %v1807 = vadd.f32 0.0, %v1806
    %v1808 = vpop.f32.mrb[0].mxu0
    %1809 = vmatprep.mubr.f32.mxu0 0.0
    %1810 = vmatmul.mubr.f32.gmra.mrb[0].mxu0 %v89
    %v1811 = vpop.f32.mrb[0].mxu0
    %v1812 = vadd.f32 0.0, %v1811
    %v1813 = vpop.f32.mrb[0].mxu0
    %1814 = vmatprep.mubr.f32.mxu0 0.0
    %1815 = vmatmul.mubr.f32.gmra.mrb[0].mxu0 %v90
    %v1816 = vpop.f32.mrb[0].mxu0
    %v1817 = vadd.f32 0.0, %v1816
    %v1818 = vpop.f32.mrb[0].mxu0
    %1819 = vmatprep.mubr.f32.mxu0 0.0
    %1820 = vmatmul.mubr.f32.gmra.mrb[0].mxu0 %v91
    %v1821 = vpop.f32.mrb[0].mxu0
    %v1822 = vadd.f32 0.0, %v1821
    %v1823 = vpop.f32.mrb[0].mxu0
    %1824 = vmatprep.mubr.f32.mxu0 0.0
    %1825 = vmatmul.mubr.f32.gmra.mrb[0].mxu0 %v92
    %v1826 = vpop.f32.mrb[0].mxu0
    %v1827 = vadd.f32 0.0, %v1826
    %v1828 = vpop.f32.mrb[0].mxu0
    %1829 = vmatprep.mubr.f32.mxu0 0.0
    %1830 = vmatmul.mubr.f32.gmra.mrb[0].mxu0 %v93
    %v1831 = vpop.f32.mrb[0].mxu0
    %v1832 = vadd.f32 0.0, %v1831
    %v1833 = vpop.f32.mrb[0].mxu0
    %1834 = vmatprep.mubr.f32.mxu0 0.0
    %1835 = vmatmul.mubr.f32.gmra.mrb[0].mxu0 %v94
    %v1836 = vpop.f32.mrb[0].mxu0
    %v1837 = vadd.f32 0.0, %v1836
    %v1838 = vpop.f32.mrb[0].mxu0
    %1839 = vdwg.mxu0
    %v1840 = vmul.f32 %v1762, 0.9
    %v1841 = vmul.f32 %v1767, 0.9
    %v1842 = vmul.f32 %v1772, 0.9
    %v1843 = vmul.f32 %v1777, 0.9
    %v1844 = vmul.f32 %v1782, 0.9
    %v1845 = vmul.f32 %v1787, 0.9
    %v1846 = vmul.f32 %v1792, 0.9
    %v1847 = vmul.f32 %v1797, 0.9
    %v1848 = vmul.f32 %v1802, 0.9
    %v1849 = vmul.f32 %v1807, 0.9
    %v1850 = vmul.f32 %v1812, 0.9
    %v1851 = vmul.f32 %v1817, 0.9
    %v1852 = vmul.f32 %v1822, 0.9
    %v1853 = vmul.f32 %v1827, 0.9
    %v1854 = vmul.f32 %v1832, 0.9
    %v1855 = vmul.f32 %v1837, 0.9
    %v1856 = vadd.f32 %v1840, %v440
    %v1857 = vadd.f32 %v1841, %v441
    %v1858 = vadd.f32 %v1842, %v442
    %v1859 = vadd.f32 %v1843, %v443
    %v1860 = vadd.f32 %v1844, %v444
    %v1861 = vadd.f32 %v1845, %v445
    %v1862 = vadd.f32 %v1846, %v446
    %v1863 = vadd.f32 %v1847, %v447
    %v1864 = vadd.f32 %v1848, %v448
    %v1865 = vadd.f32 %v1849, %v449
    %v1866 = vadd.f32 %v1850, %v450
    %v1867 = vadd.f32 %v1851, %v451
    %v1868 = vadd.f32 %v1852, %v452
    %v1869 = vadd.f32 %v1853, %v453
    %v1870 = vadd.f32 %v1854, %v454
    %v1871 = vadd.f32 %v1855, %v455
    %1872 = vmatprep.subr.mxu0 0.0
    %1873 = vmatpush1.msra.mxu0 %v1856
    %1874 = vmatprep.subr.mxu0 0.0
    %1875 = vmatpush1.msra.mxu0 %v1857
    %1876 = vmatprep.subr.mxu0 0.0
    %1877 = vmatpush1.msra.mxu0 %v1858
    %1878 = vmatprep.subr.mxu0 0.0
    %1879 = vmatpush1.msra.mxu0 %v1859
    %1880 = vmatprep.subr.mxu0 0.0
    %1881 = vmatpush1.msra.mxu0 %v1860
    %1882 = vmatprep.subr.mxu0 0.0
    %1883 = vmatpush1.msra.mxu0 %v1861
    %1884 = vmatprep.subr.mxu0 0.0
    %1885 = vmatpush1.msra.mxu0 %v1862
    %1886 = vmatprep.subr.mxu0 0.0
    %1887 = vmatpush1.msra.mxu0 %v1863
    %1888 = vmatprep.subr.mxu0 0.0
    %1889 = vmatpush1.msra.mxu0 %v1864
    %1890 = vmatprep.subr.mxu0 0.0
    %1891 = vmatpush1.msra.mxu0 %v1865
    %1892 = vmatprep.subr.mxu0 0.0
    %1893 = vmatpush1.msra.mxu0 %v1866
    %1894 = vmatprep.subr.mxu0 0.0
    %1895 = vmatpush1.msra.mxu0 %v1867
    %1896 = vmatprep.subr.mxu0 0.0
    %1897 = vmatpush1.msra.mxu0 %v1868
    %1898 = vmatprep.subr.mxu0 0.0
    %1899 = vmatpush1.msra.mxu0 %v1869
    %1900 = vmatprep.subr.mxu0 0.0
    %1901 = vmatpush1.msra.mxu0 %v1870
    %1902 = vmatprep.subr.mxu0 0.0
    %1903 = vmatpush1.msra.mxu0 %v1871
    %1904 = vmatprep.subr.mxu0 0.0
    %1905 = vmatpush1.msra.mxu0 0.0
    %1906 = vmatprep.subr.mxu0 0.0
    %1907 = vmatpush1.msra.mxu0 0.0
    %1908 = vmatprep.subr.mxu0 0.0
    %1909 = vmatpush1.msra.mxu0 0.0
    %1910 = vmatprep.subr.mxu0 0.0
    %1911 = vmatpush1.msra.mxu0 0.0
    %1912 = vmatprep.subr.mxu0 0.0
    %1913 = vmatpush1.msra.mxu0 0.0
    %1914 = vmatprep.subr.mxu0 0.0
    %1915 = vmatpush1.msra.mxu0 0.0
    %1916 = vmatprep.subr.mxu0 0.0
    %1917 = vmatpush1.msra.mxu0 0.0
    %1918 = vmatprep.subr.mxu0 0.0
    %1919 = vmatpush1.msra.mxu0 0.0
    %1920 = vmatprep.subr.mxu0 0.0
    %1921 = vmatpush1.msra.mxu0 0.0
    %1922 = vmatprep.subr.mxu0 0.0
    %1923 = vmatpush1.msra.mxu0 0.0
    %1924 = vmatprep.subr.mxu0 0.0
    %1925 = vmatpush1.msra.mxu0 0.0
    %1926 = vmatprep.subr.mxu0 0.0
    %1927 = vmatpush1.msra.mxu0 0.0
    %1928 = vmatprep.subr.mxu0 0.0
    %1929 = vmatpush1.msra.mxu0 0.0
    %1930 = vmatprep.subr.mxu0 0.0
    %1931 = vmatpush1.msra.mxu0 0.0
    %1932 = vmatprep.subr.mxu0 0.0
    %1933 = vmatpush1.msra.mxu0 0.0
    %1934 = vmatprep.subr.mxu0 0.0
    %1935 = vmatpush1.msra.mxu0 0.0
    %1936 = vmatprep.mubr.f32.mxu0 0.0
    %1937 = vmatmul.mubr.f32.gmra.mrb[0].mxu0 %v79
    %v1938 = vpop.f32.mrb[0].mxu0
    %v1939 = vadd.f32 0.0, %v1938
    %v1940 = vpop.f32.mrb[0].mxu0
    %1941 = vmatprep.mubr.f32.mxu0 0.0
    %1942 = vmatmul.mubr.f32.gmra.mrb[0].mxu0 %v80
    %v1943 = vpop.f32.mrb[0].mxu0
    %v1944 = vadd.f32 0.0, %v1943
    %v1945 = vpop.f32.mrb[0].mxu0
    %1946 = vmatprep.mubr.f32.mxu0 0.0
    %1947 = vmatmul.mubr.f32.gmra.mrb[0].mxu0 %v81
    %v1948 = vpop.f32.mrb[0].mxu0
    %v1949 = vadd.f32 0.0, %v1948
    %v1950 = vpop.f32.mrb[0].mxu0
    %1951 = vmatprep.mubr.f32.mxu0 0.0
    %1952 = vmatmul.mubr.f32.gmra.mrb[0].mxu0 %v82
    %v1953 = vpop.f32.mrb[0].mxu0
    %v1954 = vadd.f32 0.0, %v1953
    %v1955 = vpop.f32.mrb[0].mxu0
    %1956 = vmatprep.mubr.f32.mxu0 0.0
    %1957 = vmatmul.mubr.f32.gmra.mrb[0].mxu0 %v83
    %v1958 = vpop.f32.mrb[0].mxu0
    %v1959 = vadd.f32 0.0, %v1958
    %v1960 = vpop.f32.mrb[0].mxu0
    %1961 = vmatprep.mubr.f32.mxu0 0.0
    %1962 = vmatmul.mubr.f32.gmra.mrb[0].mxu0 %v84
    %v1963 = vpop.f32.mrb[0].mxu0
    %v1964 = vadd.f32 0.0, %v1963
    %v1965 = vpop.f32.mrb[0].mxu0
    %1966 = vmatprep.mubr.f32.mxu0 0.0
    %1967 = vmatmul.mubr.f32.gmra.mrb[0].mxu0 %v85
    %v1968 = vpop.f32.mrb[0].mxu0
    %v1969 = vadd.f32 0.0, %v1968
    %v1970 = vpop.f32.mrb[0].mxu0
    %1971 = vmatprep.mubr.f32.mxu0 0.0
    %1972 = vmatmul.mubr.f32.gmra.mrb[0].mxu0 %v86
    %v1973 = vpop.f32.mrb[0].mxu0
    %v1974 = vadd.f32 0.0, %v1973
    %v1975 = vpop.f32.mrb[0].mxu0
    %1976 = vmatprep.mubr.f32.mxu0 0.0
    %1977 = vmatmul.mubr.f32.gmra.mrb[0].mxu0 %v87
    %v1978 = vpop.f32.mrb[0].mxu0
    %v1979 = vadd.f32 0.0, %v1978
    %v1980 = vpop.f32.mrb[0].mxu0
    %1981 = vmatprep.mubr.f32.mxu0 0.0
    %1982 = vmatmul.mubr.f32.gmra.mrb[0].mxu0 %v88
    %v1983 = vpop.f32.mrb[0].mxu0
    %v1984 = vadd.f32 0.0, %v1983
    %v1985 = vpop.f32.mrb[0].mxu0
    %1986 = vmatprep.mubr.f32.mxu0 0.0
    %1987 = vmatmul.mubr.f32.gmra.mrb[0].mxu0 %v89
    %v1988 = vpop.f32.mrb[0].mxu0
    %v1989 = vadd.f32 0.0, %v1988
    %v1990 = vpop.f32.mrb[0].mxu0
    %1991 = vmatprep.mubr.f32.mxu0 0.0
    %1992 = vmatmul.mubr.f32.gmra.mrb[0].mxu0 %v90
    %v1993 = vpop.f32.mrb[0].mxu0
    %v1994 = vadd.f32 0.0, %v1993
    %v1995 = vpop.f32.mrb[0].mxu0
    %1996 = vmatprep.mubr.f32.mxu0 0.0
    %1997 = vmatmul.mubr.f32.gmra.mrb[0].mxu0 %v91
    %v1998 = vpop.f32.mrb[0].mxu0
    %v1999 = vadd.f32 0.0, %v1998
    %v2000 = vpop.f32.mrb[0].mxu0
    %2001 = vmatprep.mubr.f32.mxu0 0.0
    %2002 = vmatmul.mubr.f32.gmra.mrb[0].mxu0 %v92
    %v2003 = vpop.f32.mrb[0].mxu0
    %v2004 = vadd.f32 0.0, %v2003
    %v2005 = vpop.f32.mrb[0].mxu0
    %2006 = vmatprep.mubr.f32.mxu0 0.0
    %2007 = vmatmul.mubr.f32.gmra.mrb[0].mxu0 %v93
    %v2008 = vpop.f32.mrb[0].mxu0
    %v2009 = vadd.f32 0.0, %v2008
    %v2010 = vpop.f32.mrb[0].mxu0
    %2011 = vmatprep.mubr.f32.mxu0 0.0
    %2012 = vmatmul.mubr.f32.gmra.mrb[0].mxu0 %v94
    %v2013 = vpop.f32.mrb[0].mxu0
    %v2014 = vadd.f32 0.0, %v2013
    %v2015 = vpop.f32.mrb[0].mxu0
    %2016 = vdwg.mxu0
    %v2017 = vmul.f32 %v1939, 0.9
    %v2018 = vmul.f32 %v1944, 0.9
    %v2019 = vmul.f32 %v1949, 0.9
    %v2020 = vmul.f32 %v1954, 0.9
    %v2021 = vmul.f32 %v1959, 0.9
    %v2022 = vmul.f32 %v1964, 0.9
    %v2023 = vmul.f32 %v1969, 0.9
    %v2024 = vmul.f32 %v1974, 0.9
    %v2025 = vmul.f32 %v1979, 0.9
    %v2026 = vmul.f32 %v1984, 0.9
    %v2027 = vmul.f32 %v1989, 0.9
    %v2028 = vmul.f32 %v1994, 0.9
    %v2029 = vmul.f32 %v1999, 0.9
    %v2030 = vmul.f32 %v2004, 0.9
    %v2031 = vmul.f32 %v2009, 0.9
    %v2032 = vmul.f32 %v2014, 0.9
    %v2033 = vadd.f32 %v2017, %v440
    %v2034 = vadd.f32 %v2018, %v441
    %v2035 = vadd.f32 %v2019, %v442
    %v2036 = vadd.f32 %v2020, %v443
    %v2037 = vadd.f32 %v2021, %v444
    %v2038 = vadd.f32 %v2022, %v445
    %v2039 = vadd.f32 %v2023, %v446
    %v2040 = vadd.f32 %v2024, %v447
    %v2041 = vadd.f32 %v2025, %v448
    %v2042 = vadd.f32 %v2026, %v449
    %v2043 = vadd.f32 %v2027, %v450
    %v2044 = vadd.f32 %v2028, %v451
    %v2045 = vadd.f32 %v2029, %v452
    %v2046 = vadd.f32 %v2030, %v453
    %v2047 = vadd.f32 %v2031, %v454
    %v2048 = vadd.f32 %v2032, %v455
    %2049 = vmatprep.subr.mxu0 0.0
    %2050 = vmatpush1.msra.mxu0 %v2033
    %2051 = vmatprep.subr.mxu0 0.0
    %2052 = vmatpush1.msra.mxu0 %v2034
    %2053 = vmatprep.subr.mxu0 0.0
    %2054 = vmatpush1.msra.mxu0 %v2035
    %2055 = vmatprep.subr.mxu0 0.0
    %2056 = vmatpush1.msra.mxu0 %v2036
    %2057 = vmatprep.subr.mxu0 0.0
    %2058 = vmatpush1.msra.mxu0 %v2037
    %2059 = vmatprep.subr.mxu0 0.0
    %2060 = vmatpush1.msra.mxu0 %v2038
    %2061 = vmatprep.subr.mxu0 0.0
    %2062 = vmatpush1.msra.mxu0 %v2039
    %2063 = vmatprep.subr.mxu0 0.0
    %2064 = vmatpush1.msra.mxu0 %v2040
    %2065 = vmatprep.subr.mxu0 0.0
    %2066 = vmatpush1.msra.mxu0 %v2041
    %2067 = vmatprep.subr.mxu0 0.0
    %2068 = vmatpush1.msra.mxu0 %v2042
    %2069 = vmatprep.subr.mxu0 0.0
    %2070 = vmatpush1.msra.mxu0 %v2043
    %2071 = vmatprep.subr.mxu0 0.0
    %2072 = vmatpush1.msra.mxu0 %v2044
    %2073 = vmatprep.subr.mxu0 0.0
    %2074 = vmatpush1.msra.mxu0 %v2045
    %2075 = vmatprep.subr.mxu0 0.0
    %2076 = vmatpush1.msra.mxu0 %v2046
    %2077 = vmatprep.subr.mxu0 0.0
    %2078 = vmatpush1.msra.mxu0 %v2047
    %2079 = vmatprep.subr.mxu0 0.0
    %2080 = vmatpush1.msra.mxu0 %v2048
    %2081 = vmatprep.subr.mxu0 0.0
    %2082 = vmatpush1.msra.mxu0 0.0
    %2083 = vmatprep.subr.mxu0 0.0
    %2084 = vmatpush1.msra.mxu0 0.0
    %2085 = vmatprep.subr.mxu0 0.0
    %2086 = vmatpush1.msra.mxu0 0.0
    %2087 = vmatprep.subr.mxu0 0.0
    %2088 = vmatpush1.msra.mxu0 0.0
    %2089 = vmatprep.subr.mxu0 0.0
    %2090 = vmatpush1.msra.mxu0 0.0
    %2091 = vmatprep.subr.mxu0 0.0
    %2092 = vmatpush1.msra.mxu0 0.0
    %2093 = vmatprep.subr.mxu0 0.0
    %2094 = vmatpush1.msra.mxu0 0.0
    %2095 = vmatprep.subr.mxu0 0.0
    %2096 = vmatpush1.msra.mxu0 0.0
    %2097 = vmatprep.subr.mxu0 0.0
    %2098 = vmatpush1.msra.mxu0 0.0
    %2099 = vmatprep.subr.mxu0 0.0
    %2100 = vmatpush1.msra.mxu0 0.0
    %2101 = vmatprep.subr.mxu0 0.0
    %2102 = vmatpush1.msra.mxu0 0.0
    %2103 = vmatprep.subr.mxu0 0.0
    %2104 = vmatpush1.msra.mxu0 0.0
    %2105 = vmatprep.subr.mxu0 0.0
    %2106 = vmatpush1.msra.mxu0 0.0
    %2107 = vmatprep.subr.mxu0 0.0
    %2108 = vmatpush1.msra.mxu0 0.0
    %2109 = vmatprep.subr.mxu0 0.0
    %2110 = vmatpush1.msra.mxu0 0.0
    %2111 = vmatprep.subr.mxu0 0.0
    %2112 = vmatpush1.msra.mxu0 0.0
    %2113 = vmatprep.mubr.f32.mxu0 0.0
    %2114 = vmatmul.mubr.f32.gmra.mrb[0].mxu0 %v79
    %v2115 = vpop.f32.mrb[0].mxu0
    %v2116 = vadd.f32 0.0, %v2115
    %v2117 = vpop.f32.mrb[0].mxu0
    %2118 = vmatprep.mubr.f32.mxu0 0.0
    %2119 = vmatmul.mubr.f32.gmra.mrb[0].mxu0 %v80
    %v2120 = vpop.f32.mrb[0].mxu0
    %v2121 = vadd.f32 0.0, %v2120
    %v2122 = vpop.f32.mrb[0].mxu0
    %2123 = vmatprep.mubr.f32.mxu0 0.0
    %2124 = vmatmul.mubr.f32.gmra.mrb[0].mxu0 %v81
    %v2125 = vpop.f32.mrb[0].mxu0
    %v2126 = vadd.f32 0.0, %v2125
    %v2127 = vpop.f32.mrb[0].mxu0
    %2128 = vmatprep.mubr.f32.mxu0 0.0
    %2129 = vmatmul.mubr.f32.gmra.mrb[0].mxu0 %v82
    %v2130 = vpop.f32.mrb[0].mxu0
    %v2131 = vadd.f32 0.0, %v2130
    %v2132 = vpop.f32.mrb[0].mxu0
    %2133 = vmatprep.mubr.f32.mxu0 0.0
    %2134 = vmatmul.mubr.f32.gmra.mrb[0].mxu0 %v83
    %v2135 = vpop.f32.mrb[0].mxu0
    %v2136 = vadd.f32 0.0, %v2135
    %v2137 = vpop.f32.mrb[0].mxu0
    %2138 = vmatprep.mubr.f32.mxu0 0.0
    %2139 = vmatmul.mubr.f32.gmra.mrb[0].mxu0 %v84
    %v2140 = vpop.f32.mrb[0].mxu0
    %v2141 = vadd.f32 0.0, %v2140
    %v2142 = vpop.f32.mrb[0].mxu0
    %2143 = vmatprep.mubr.f32.mxu0 0.0
    %2144 = vmatmul.mubr.f32.gmra.mrb[0].mxu0 %v85
    %v2145 = vpop.f32.mrb[0].mxu0
    %v2146 = vadd.f32 0.0, %v2145
    %v2147 = vpop.f32.mrb[0].mxu0
    %2148 = vmatprep.mubr.f32.mxu0 0.0
    %2149 = vmatmul.mubr.f32.gmra.mrb[0].mxu0 %v86
    %v2150 = vpop.f32.mrb[0].mxu0
    %v2151 = vadd.f32 0.0, %v2150
    %v2152 = vpop.f32.mrb[0].mxu0
    %2153 = vmatprep.mubr.f32.mxu0 0.0
    %2154 = vmatmul.mubr.f32.gmra.mrb[0].mxu0 %v87
    %v2155 = vpop.f32.mrb[0].mxu0
    %v2156 = vadd.f32 0.0, %v2155
    %v2157 = vpop.f32.mrb[0].mxu0
    %2158 = vmatprep.mubr.f32.mxu0 0.0
    %2159 = vmatmul.mubr.f32.gmra.mrb[0].mxu0 %v88
    %v2160 = vpop.f32.mrb[0].mxu0
    %v2161 = vadd.f32 0.0, %v2160
    %v2162 = vpop.f32.mrb[0].mxu0
    %2163 = vmatprep.mubr.f32.mxu0 0.0
    %2164 = vmatmul.mubr.f32.gmra.mrb[0].mxu0 %v89
    %v2165 = vpop.f32.mrb[0].mxu0
    %v2166 = vadd.f32 0.0, %v2165
    %v2167 = vpop.f32.mrb[0].mxu0
    %2168 = vmatprep.mubr.f32.mxu0 0.0
    %2169 = vmatmul.mubr.f32.gmra.mrb[0].mxu0 %v90
    %v2170 = vpop.f32.mrb[0].mxu0
    %v2171 = vadd.f32 0.0, %v2170
    %v2172 = vpop.f32.mrb[0].mxu0
    %2173 = vmatprep.mubr.f32.mxu0 0.0
    %2174 = vmatmul.mubr.f32.gmra.mrb[0].mxu0 %v91
    %v2175 = vpop.f32.mrb[0].mxu0
    %v2176 = vadd.f32 0.0, %v2175
    %v2177 = vpop.f32.mrb[0].mxu0
    %2178 = vmatprep.mubr.f32.mxu0 0.0
    %2179 = vmatmul.mubr.f32.gmra.mrb[0].mxu0 %v92
    %v2180 = vpop.f32.mrb[0].mxu0
    %v2181 = vadd.f32 0.0, %v2180
    %v2182 = vpop.f32.mrb[0].mxu0
    %2183 = vmatprep.mubr.f32.mxu0 0.0
    %2184 = vmatmul.mubr.f32.gmra.mrb[0].mxu0 %v93
    %v2185 = vpop.f32.mrb[0].mxu0
    %v2186 = vadd.f32 0.0, %v2185
    %v2187 = vpop.f32.mrb[0].mxu0
    %2188 = vmatprep.mubr.f32.mxu0 0.0
    %2189 = vmatmul.mubr.f32.gmra.mrb[0].mxu0 %v94
    %v2190 = vpop.f32.mrb[0].mxu0
    %v2191 = vadd.f32 0.0, %v2190
    %v2192 = vpop.f32.mrb[0].mxu0
    %2193 = vdwg.mxu0
    %v2194 = vmul.f32 %v2116, 0.9
    %v2195 = vmul.f32 %v2121, 0.9
    %v2196 = vmul.f32 %v2126, 0.9
    %v2197 = vmul.f32 %v2131, 0.9
    %v2198 = vmul.f32 %v2136, 0.9
    %v2199 = vmul.f32 %v2141, 0.9
    %v2200 = vmul.f32 %v2146, 0.9
    %v2201 = vmul.f32 %v2151, 0.9
    %v2202 = vmul.f32 %v2156, 0.9
    %v2203 = vmul.f32 %v2161, 0.9
    %v2204 = vmul.f32 %v2166, 0.9
    %v2205 = vmul.f32 %v2171, 0.9
    %v2206 = vmul.f32 %v2176, 0.9
    %v2207 = vmul.f32 %v2181, 0.9
    %v2208 = vmul.f32 %v2186, 0.9
    %v2209 = vmul.f32 %v2191, 0.9
    %v2210 = vadd.f32 %v2194, %v440
    %v2211 = vadd.f32 %v2195, %v441
    %v2212 = vadd.f32 %v2196, %v442
    %v2213 = vadd.f32 %v2197, %v443
    %v2214 = vadd.f32 %v2198, %v444
    %v2215 = vadd.f32 %v2199, %v445
    %v2216 = vadd.f32 %v2200, %v446
    %v2217 = vadd.f32 %v2201, %v447
    %v2218 = vadd.f32 %v2202, %v448
    %v2219 = vadd.f32 %v2203, %v449
    %v2220 = vadd.f32 %v2204, %v450
    %v2221 = vadd.f32 %v2205, %v451
    %v2222 = vadd.f32 %v2206, %v452
    %v2223 = vadd.f32 %v2207, %v453
    %v2224 = vadd.f32 %v2208, %v454
    %v2225 = vadd.f32 %v2209, %v455
    %v2226 = vld [vmem:[#allocation8] sm:$0xff]
    %v2227 = vld [vmem:[#allocation8 + $0x8] sm:$0xff]
    %v2228 = vld [vmem:[#allocation8 + $0x10] sm:$0xff]
    %v2229 = vld [vmem:[#allocation8 + $0x18] sm:$0xff]
    %v2230 = vld [vmem:[#allocation8 + $0x20] sm:$0xff]
    %v2231 = vld [vmem:[#allocation8 + $0x28] sm:$0xff]
    %v2232 = vld [vmem:[#allocation8 + $0x30] sm:$0xff]
    %v2233 = vld [vmem:[#allocation8 + $0x38] sm:$0xff]
    %v2234 = vld [vmem:[#allocation8 + $0x40] sm:$0xff]
    %v2235 = vld [vmem:[#allocation8 + $0x48] sm:$0xff]
    %v2236 = vld [vmem:[#allocation8 + $0x50] sm:$0xff]
    %v2237 = vld [vmem:[#allocation8 + $0x58] sm:$0xff]
    %v2238 = vld [vmem:[#allocation8 + $0x60] sm:$0xff]
    %v2239 = vld [vmem:[#allocation8 + $0x68] sm:$0xff]
    %v2240 = vld [vmem:[#allocation8 + $0x70] sm:$0xff]
    %v2241 = vld [vmem:[#allocation8 + $0x78] sm:$0xff]
    %v2242 = vld [vmem:[%s5] sm:$0x1]
    %v2244 = vlaneseq
    %v2245 = vshrl.u32 %v2244, 7
    %v2246 = vsub.s32 0, %v2245
    %v2247 = vrot.slane %v2242, %v2246
    %2249 = vmatprep.subr.mxu0 0.0
    %2250 = vmatpush1.msra.mxu0 %v2226
    %2251 = vmatprep.subr.mxu0 0.0
    %2252 = vmatpush1.msra.mxu0 %v2227
    %2253 = vmatprep.subr.mxu0 0.0
    %2254 = vmatpush1.msra.mxu0 %v2228
    %2255 = vmatprep.subr.mxu0 0.0
    %2256 = vmatpush1.msra.mxu0 %v2229
    %2257 = vmatprep.subr.mxu0 0.0
    %2258 = vmatpush1.msra.mxu0 %v2230
    %2259 = vmatprep.subr.mxu0 0.0
    %2260 = vmatpush1.msra.mxu0 %v2231
    %2261 = vmatprep.subr.mxu0 0.0
    %2262 = vmatpush1.msra.mxu0 %v2232
    %2263 = vmatprep.subr.mxu0 0.0
    %2264 = vmatpush1.msra.mxu0 %v2233
    %2265 = vmatprep.subr.mxu0 0.0
    %2266 = vmatpush1.msra.mxu0 %v2234
    %2267 = vmatprep.subr.mxu0 0.0
    %2268 = vmatpush1.msra.mxu0 %v2235
    %2269 = vmatprep.subr.mxu0 0.0
    %2270 = vmatpush1.msra.mxu0 %v2236
    %2271 = vmatprep.subr.mxu0 0.0
    %2272 = vmatpush1.msra.mxu0 %v2237
    %2273 = vmatprep.subr.mxu0 0.0
    %2274 = vmatpush1.msra.mxu0 %v2238
    %2275 = vmatprep.subr.mxu0 0.0
    %2276 = vmatpush1.msra.mxu0 %v2239
    %2277 = vmatprep.subr.mxu0 0.0
    %2278 = vmatpush1.msra.mxu0 %v2240
    %2279 = vmatprep.subr.mxu0 0.0
    %2280 = vmatpush1.msra.mxu0 %v2241
    %2281 = vmatprep.subr.mxu0 0.0
    %2282 = vmatpush1.msra.mxu0 0.0
    %2283 = vmatprep.subr.mxu0 0.0
    %2284 = vmatpush1.msra.mxu0 0.0
    %2285 = vmatprep.subr.mxu0 0.0
    %2286 = vmatpush1.msra.mxu0 0.0
    %2287 = vmatprep.subr.mxu0 0.0
    %2288 = vmatpush1.msra.mxu0 0.0
    %2289 = vmatprep.subr.mxu0 0.0
    %2290 = vmatpush1.msra.mxu0 0.0
    %2291 = vmatprep.subr.mxu0 0.0
    %2292 = vmatpush1.msra.mxu0 0.0
    %2293 = vmatprep.subr.mxu0 0.0
    %2294 = vmatpush1.msra.mxu0 0.0
    %2295 = vmatprep.subr.mxu0 0.0
    %2296 = vmatpush1.msra.mxu0 0.0
    %2297 = vmatprep.subr.mxu0 0.0
    %2298 = vmatpush1.msra.mxu0 0.0
    %2299 = vmatprep.subr.mxu0 0.0
    %2300 = vmatpush1.msra.mxu0 0.0
    %2301 = vmatprep.subr.mxu0 0.0
    %2302 = vmatpush1.msra.mxu0 0.0
    %2303 = vmatprep.subr.mxu0 0.0
    %2304 = vmatpush1.msra.mxu0 0.0
    %2305 = vmatprep.subr.mxu0 0.0
    %2306 = vmatpush1.msra.mxu0 0.0
    %2307 = vmatprep.subr.mxu0 0.0
    %2308 = vmatpush1.msra.mxu0 0.0
    %2309 = vmatprep.subr.mxu0 0.0
    %2310 = vmatpush1.msra.mxu0 0.0
    %2311 = vmatprep.subr.mxu0 0.0
    %2312 = vmatpush1.msra.mxu0 0.0
    %2313 = vmatprep.mubr.f32.mxu0 0.0
    %2314 = vmatmul.mubr.f32.gmra.mrb[0].mxu0 %v2210
    %v2315 = vpop.f32.mrb[0].mxu0
    %v2316 = vadd.f32 %v2247, %v2315
    %v2317 = vpop.f32.mrb[0].mxu0
    %2318 = vmatprep.mubr.f32.mxu0 0.0
    %2319 = vmatmul.mubr.f32.gmra.mrb[0].mxu0 %v2211
    %v2320 = vpop.f32.mrb[0].mxu0
    %v2321 = vadd.f32 %v2247, %v2320
    %v2322 = vpop.f32.mrb[0].mxu0
    %2323 = vmatprep.mubr.f32.mxu0 0.0
    %2324 = vmatmul.mubr.f32.gmra.mrb[0].mxu0 %v2212
    %v2325 = vpop.f32.mrb[0].mxu0
    %v2326 = vadd.f32 %v2247, %v2325
    %v2327 = vpop.f32.mrb[0].mxu0
    %2328 = vmatprep.mubr.f32.mxu0 0.0
    %2329 = vmatmul.mubr.f32.gmra.mrb[0].mxu0 %v2213
    %v2330 = vpop.f32.mrb[0].mxu0
    %v2331 = vadd.f32 %v2247, %v2330
    %v2332 = vpop.f32.mrb[0].mxu0
    %2333 = vmatprep.mubr.f32.mxu0 0.0
    %2334 = vmatmul.mubr.f32.gmra.mrb[0].mxu0 %v2214
    %v2335 = vpop.f32.mrb[0].mxu0
    %v2336 = vadd.f32 %v2247, %v2335
    %v2337 = vpop.f32.mrb[0].mxu0
    %2338 = vmatprep.mubr.f32.mxu0 0.0
    %2339 = vmatmul.mubr.f32.gmra.mrb[0].mxu0 %v2215
    %v2340 = vpop.f32.mrb[0].mxu0
    %v2341 = vadd.f32 %v2247, %v2340
    %v2342 = vpop.f32.mrb[0].mxu0
    %2343 = vmatprep.mubr.f32.mxu0 0.0
    %2344 = vmatmul.mubr.f32.gmra.mrb[0].mxu0 %v2216
    %v2345 = vpop.f32.mrb[0].mxu0
    %v2346 = vadd.f32 %v2247, %v2345
    %v2347 = vpop.f32.mrb[0].mxu0
    %2348 = vmatprep.mubr.f32.mxu0 0.0
    %2349 = vmatmul.mubr.f32.gmra.mrb[0].mxu0 %v2217
    %v2350 = vpop.f32.mrb[0].mxu0
    %v2351 = vadd.f32 %v2247, %v2350
    %v2352 = vpop.f32.mrb[0].mxu0
    %2353 = vmatprep.mubr.f32.mxu0 0.0
    %2354 = vmatmul.mubr.f32.gmra.mrb[0].mxu0 %v2218
    %v2355 = vpop.f32.mrb[0].mxu0
    %v2356 = vadd.f32 %v2247, %v2355
    %v2357 = vpop.f32.mrb[0].mxu0
    %2358 = vmatprep.mubr.f32.mxu0 0.0
    %2359 = vmatmul.mubr.f32.gmra.mrb[0].mxu0 %v2219
    %v2360 = vpop.f32.mrb[0].mxu0
    %v2361 = vadd.f32 %v2247, %v2360
    %v2362 = vpop.f32.mrb[0].mxu0
    %2363 = vmatprep.mubr.f32.mxu0 0.0
    %2364 = vmatmul.mubr.f32.gmra.mrb[0].mxu0 %v2220
    %v2365 = vpop.f32.mrb[0].mxu0
    %v2366 = vadd.f32 %v2247, %v2365
    %v2367 = vpop.f32.mrb[0].mxu0
    %2368 = vmatprep.mubr.f32.mxu0 0.0
    %2369 = vmatmul.mubr.f32.gmra.mrb[0].mxu0 %v2221
    %v2370 = vpop.f32.mrb[0].mxu0
    %v2371 = vadd.f32 %v2247, %v2370
    %v2372 = vpop.f32.mrb[0].mxu0
    %2373 = vmatprep.mubr.f32.mxu0 0.0
    %2374 = vmatmul.mubr.f32.gmra.mrb[0].mxu0 %v2222
    %v2375 = vpop.f32.mrb[0].mxu0
    %v2376 = vadd.f32 %v2247, %v2375
    %v2377 = vpop.f32.mrb[0].mxu0
    %2378 = vmatprep.mubr.f32.mxu0 0.0
    %2379 = vmatmul.mubr.f32.gmra.mrb[0].mxu0 %v2223
    %v2380 = vpop.f32.mrb[0].mxu0
    %v2381 = vadd.f32 %v2247, %v2380
    %v2382 = vpop.f32.mrb[0].mxu0
    %2383 = vmatprep.mubr.f32.mxu0 0.0
    %2384 = vmatmul.mubr.f32.gmra.mrb[0].mxu0 %v2224
    %v2385 = vpop.f32.mrb[0].mxu0
    %v2386 = vadd.f32 %v2247, %v2385
    %v2387 = vpop.f32.mrb[0].mxu0
    %2388 = vmatprep.mubr.f32.mxu0 0.0
    %2389 = vmatmul.mubr.f32.gmra.mrb[0].mxu0 %v2225
    %v2390 = vpop.f32.mrb[0].mxu0
    %v2391 = vadd.f32 %v2247, %v2390
    %v2392 = vpop.f32.mrb[0].mxu0
    %2393 = vdwg.mxu0
    %v2394 = vlaneseq
    %v2395 = vand.u32 %v2394, 127
    %vm2396 = vcmp.lt.s32.totalorder %v2395, 16
    %v2397 = vsel %vm2396, %v2316, -1e+30
    %v2398 = vsel %vm2396, %v2321, -1e+30
    %v2399 = vsel %vm2396, %v2326, -1e+30
    %v2400 = vsel %vm2396, %v2331, -1e+30
    %v2401 = vsel %vm2396, %v2336, -1e+30
    %v2402 = vsel %vm2396, %v2341, -1e+30
    %v2403 = vsel %vm2396, %v2346, -1e+30
    %v2404 = vsel %vm2396, %v2351, -1e+30
    %v2405 = vsel %vm2396, %v2356, -1e+30
    %v2406 = vsel %vm2396, %v2361, -1e+30
    %v2407 = vsel %vm2396, %v2366, -1e+30
    %v2408 = vsel %vm2396, %v2371, -1e+30
    %v2409 = vsel %vm2396, %v2376, -1e+30
    %v2410 = vsel %vm2396, %v2381, -1e+30
    %v2411 = vsel %vm2396, %v2386, -1e+30
    %v2412 = vsel %vm2396, %v2391, -1e+30
    %2413 = vmax.xlane.f32.xlu0 %v2397
    %v2414 = vpop.xlane.xlu0 %2413
    %2415 = vmax.xlane.f32.xlu0 %v2398
    %v2416 = vpop.xlane.xlu0 %2415
    %2417 = vmax.xlane.f32.xlu0 %v2399
    %v2418 = vpop.xlane.xlu0 %2417
    %2419 = vmax.xlane.f32.xlu0 %v2400
    %v2420 = vpop.xlane.xlu0 %2419
    %2421 = vmax.xlane.f32.xlu0 %v2401
    %v2422 = vpop.xlane.xlu0 %2421
    %2423 = vmax.xlane.f32.xlu0 %v2402
    %v2424 = vpop.xlane.xlu0 %2423
    %2425 = vmax.xlane.f32.xlu0 %v2403
    %v2426 = vpop.xlane.xlu0 %2425
    %2427 = vmax.xlane.f32.xlu0 %v2404
    %v2428 = vpop.xlane.xlu0 %2427
    %2429 = vmax.xlane.f32.xlu0 %v2405
    %v2430 = vpop.xlane.xlu0 %2429
    %2431 = vmax.xlane.f32.xlu0 %v2406
    %v2432 = vpop.xlane.xlu0 %2431
    %2433 = vmax.xlane.f32.xlu0 %v2407
    %v2434 = vpop.xlane.xlu0 %2433
    %2435 = vmax.xlane.f32.xlu0 %v2408
    %v2436 = vpop.xlane.xlu0 %2435
    %2437 = vmax.xlane.f32.xlu0 %v2409
    %v2438 = vpop.xlane.xlu0 %2437
    %2439 = vmax.xlane.f32.xlu0 %v2410
    %v2440 = vpop.xlane.xlu0 %2439
    %2441 = vmax.xlane.f32.xlu0 %v2411
    %v2442 = vpop.xlane.xlu0 %2441
    %2443 = vmax.xlane.f32.xlu0 %v2412
    %v2444 = vpop.xlane.xlu0 %2443
    %v2445 = vsub.f32 %v2397, %v2414
    %v2446 = vsub.f32 %v2398, %v2416
    %v2447 = vsub.f32 %v2399, %v2418
    %v2448 = vsub.f32 %v2400, %v2420
    %v2449 = vsub.f32 %v2401, %v2422
    %v2450 = vsub.f32 %v2402, %v2424
    %v2451 = vsub.f32 %v2403, %v2426
    %v2452 = vsub.f32 %v2404, %v2428
    %v2453 = vsub.f32 %v2405, %v2430
    %v2454 = vsub.f32 %v2406, %v2432
    %v2455 = vsub.f32 %v2407, %v2434
    %v2456 = vsub.f32 %v2408, %v2436
    %v2457 = vsub.f32 %v2409, %v2438
    %v2458 = vsub.f32 %v2410, %v2440
    %v2459 = vsub.f32 %v2411, %v2442
    %v2460 = vsub.f32 %v2412, %v2444
    %v2461 = vmul.f32 %v2445, 1.442695
    %v2462 = vpow.pop %v2461
    %v2463 = vmul.f32 %v2446, 1.442695
    %v2464 = vpow.pop %v2463
    %v2465 = vmul.f32 %v2447, 1.442695
    %v2466 = vpow.pop %v2465
    %v2467 = vmul.f32 %v2448, 1.442695
    %v2468 = vpow.pop %v2467
    %v2469 = vmul.f32 %v2449, 1.442695
    %v2470 = vpow.pop %v2469
    %v2471 = vmul.f32 %v2450, 1.442695
    %v2472 = vpow.pop %v2471
    %v2473 = vmul.f32 %v2451, 1.442695
    %v2474 = vpow.pop %v2473
    %v2475 = vmul.f32 %v2452, 1.442695
    %v2476 = vpow.pop %v2475
    %v2477 = vmul.f32 %v2453, 1.442695
    %v2478 = vpow.pop %v2477
    %v2479 = vmul.f32 %v2454, 1.442695
    %v2480 = vpow.pop %v2479
    %v2481 = vmul.f32 %v2455, 1.442695
    %v2482 = vpow.pop %v2481
    %v2483 = vmul.f32 %v2456, 1.442695
    %v2484 = vpow.pop %v2483
    %v2485 = vmul.f32 %v2457, 1.442695
    %v2486 = vpow.pop %v2485
    %v2487 = vmul.f32 %v2458, 1.442695
    %v2488 = vpow.pop %v2487
    %v2489 = vmul.f32 %v2459, 1.442695
    %v2490 = vpow.pop %v2489
    %v2491 = vmul.f32 %v2460, 1.442695
    %v2492 = vpow.pop %v2491
    %2493 = vadd.xlane.f32.xlu0 %v2462
    %v2494 = vpop.xlane.xlu0 %2493
    %2495 = vadd.xlane.f32.xlu0 %v2464
    %v2496 = vpop.xlane.xlu0 %2495
    %2497 = vadd.xlane.f32.xlu0 %v2466
    %v2498 = vpop.xlane.xlu0 %2497
    %2499 = vadd.xlane.f32.xlu0 %v2468
    %v2500 = vpop.xlane.xlu0 %2499
    %2501 = vadd.xlane.f32.xlu0 %v2470
    %v2502 = vpop.xlane.xlu0 %2501
    %2503 = vadd.xlane.f32.xlu0 %v2472
    %v2504 = vpop.xlane.xlu0 %2503
    %2505 = vadd.xlane.f32.xlu0 %v2474
    %v2506 = vpop.xlane.xlu0 %2505
    %2507 = vadd.xlane.f32.xlu0 %v2476
    %v2508 = vpop.xlane.xlu0 %2507
    %2509 = vadd.xlane.f32.xlu0 %v2478
    %v2510 = vpop.xlane.xlu0 %2509
    %2511 = vadd.xlane.f32.xlu0 %v2480
    %v2512 = vpop.xlane.xlu0 %2511
    %2513 = vadd.xlane.f32.xlu0 %v2482
    %v2514 = vpop.xlane.xlu0 %2513
    %2515 = vadd.xlane.f32.xlu0 %v2484
    %v2516 = vpop.xlane.xlu0 %2515
    %2517 = vadd.xlane.f32.xlu0 %v2486
    %v2518 = vpop.xlane.xlu0 %2517
    %2519 = vadd.xlane.f32.xlu0 %v2488
    %v2520 = vpop.xlane.xlu0 %2519
    %2521 = vadd.xlane.f32.xlu0 %v2490
    %v2522 = vpop.xlane.xlu0 %2521
    %2523 = vadd.xlane.f32.xlu0 %v2492
    %v2524 = vpop.xlane.xlu0 %2523
    %v2525 = vlog2.pop %v2494
    %v2526 = vmul.f32 %v2525, 0.6931472
    %v2527 = vlog2.pop %v2496
    %v2528 = vmul.f32 %v2527, 0.6931472
    %v2529 = vlog2.pop %v2498
    %v2530 = vmul.f32 %v2529, 0.6931472
    %v2531 = vlog2.pop %v2500
    %v2532 = vmul.f32 %v2531, 0.6931472
    %v2533 = vlog2.pop %v2502
    %v2534 = vmul.f32 %v2533, 0.6931472
    %v2535 = vlog2.pop %v2504
    %v2536 = vmul.f32 %v2535, 0.6931472
    %v2537 = vlog2.pop %v2506
    %v2538 = vmul.f32 %v2537, 0.6931472
    %v2539 = vlog2.pop %v2508
    %v2540 = vmul.f32 %v2539, 0.6931472
    %v2541 = vlog2.pop %v2510
    %v2542 = vmul.f32 %v2541, 0.6931472
    %v2543 = vlog2.pop %v2512
    %v2544 = vmul.f32 %v2543, 0.6931472
    %v2545 = vlog2.pop %v2514
    %v2546 = vmul.f32 %v2545, 0.6931472
    %v2547 = vlog2.pop %v2516
    %v2548 = vmul.f32 %v2547, 0.6931472
    %v2549 = vlog2.pop %v2518
    %v2550 = vmul.f32 %v2549, 0.6931472
    %v2551 = vlog2.pop %v2520
    %v2552 = vmul.f32 %v2551, 0.6931472
    %v2553 = vlog2.pop %v2522
    %v2554 = vmul.f32 %v2553, 0.6931472
    %v2555 = vlog2.pop %v2524
    %v2556 = vmul.f32 %v2555, 0.6931472
    %v2557 = vsub.f32 %v2445, %v2526
    %v2558 = vsub.f32 %v2446, %v2528
    %v2559 = vsub.f32 %v2447, %v2530
    %v2560 = vsub.f32 %v2448, %v2532
    %v2561 = vsub.f32 %v2449, %v2534
    %v2562 = vsub.f32 %v2450, %v2536
    %v2563 = vsub.f32 %v2451, %v2538
    %v2564 = vsub.f32 %v2452, %v2540
    %v2565 = vsub.f32 %v2453, %v2542
    %v2566 = vsub.f32 %v2454, %v2544
    %v2567 = vsub.f32 %v2455, %v2546
    %v2568 = vsub.f32 %v2456, %v2548
    %v2569 = vsub.f32 %v2457, %v2550
    %v2570 = vsub.f32 %v2458, %v2552
    %v2571 = vsub.f32 %v2459, %v2554
    %v2572 = vsub.f32 %v2460, %v2556
    %2573 = vst [vmem:[#allocation10] sm:$0xff] %v2557
    %2574 = vst [vmem:[#allocation10 + $0x8] sm:$0xff] %v2558
    %2575 = vst [vmem:[#allocation10 + $0x10] sm:$0xff] %v2559
    %2576 = vst [vmem:[#allocation10 + $0x18] sm:$0xff] %v2560
    %2577 = vst [vmem:[#allocation10 + $0x20] sm:$0xff] %v2561
    %2578 = vst [vmem:[#allocation10 + $0x28] sm:$0xff] %v2562
    %2579 = vst [vmem:[#allocation10 + $0x30] sm:$0xff] %v2563
    %2580 = vst [vmem:[#allocation10 + $0x38] sm:$0xff] %v2564
    %2581 = vst [vmem:[#allocation10 + $0x40] sm:$0xff] %v2565
    %2582 = vst [vmem:[#allocation10 + $0x48] sm:$0xff] %v2566
    %2583 = vst [vmem:[#allocation10 + $0x50] sm:$0xff] %v2567
    %2584 = vst [vmem:[#allocation10 + $0x58] sm:$0xff] %v2568
    %2585 = vst [vmem:[#allocation10 + $0x60] sm:$0xff] %v2569
    %2586 = vst [vmem:[#allocation10 + $0x68] sm:$0xff] %v2570
    %2587 = vst [vmem:[#allocation10 + $0x70] sm:$0xff] %v2571
    %2588 = vst [vmem:[#allocation10 + $0x78] sm:$0xff] %v2572
    // Predicated region
    $region42: #{tpu_custom_call.1} parent=1 // pred_check
      _
    $region43: #{tpu_custom_call.1} parent=1 // pred_check_branch
      %2590 = sbr.rel (0) target = $region45
    $region44: #{tpu_custom_call.1} parent=1 // pred_region
      %s2592 = ssub.s32 2048, 2048
      %2593 = vsyncadd [#allocation4], %s2592
      %s2594 = sshll.u32 [#allocation10], 4
      %s2595 = int_to_ptr.vmem [resolvable:$true] %s2594
      %2600 = dma.vmem_to_hbm [thread:$0]  %s2595, 2048, %s6, [#allocation4], 128, 128, 8
    $region45: #{tpu_custom_call.1} parent=1 // pred_fallthru
      _
    // Predicated region
    $region46: #{tpu_custom_call.1} parent=1 // pred_check
      _
    $region47: #{tpu_custom_call.1} parent=1 // pred_check_branch
      %2602 = sbr.rel (0) target = $region49
    $region48: #{tpu_custom_call.1} parent=1 // pred_region
      %2603 = dma.done [#allocation4], 2048
    $region49: #{tpu_custom_call.1} parent=1 // pred_fallthru
      _
    %2604 = vsyncpa [#allocation3], 1
    %2605 = vsyncpa [#allocation6], 1
    %2606 = vsyncpa [#allocation9], 1
    %2607 = vsyncpa [#allocation4], 1

</llo_original>
